<compile_context>
chip_gen: v7x
topology: tpu7x:2x2x1
jax: 0.10.0
libtpu: 0.0.40
codegen_flags: <defaults>
</compile_context>

<pallas_src>
import functools

import jax
import jax.numpy as jnp
import numpy as np
from jax import lax
from jax.experimental import pallas as pl
from jax.experimental.pallas import tpu as pltpu

EPS = 1e-5


def bottleneck_kernel(inv_n,
                      x_ref, w1_ref, r_ref, m_ref, w3_ref,
                      tcp_ref, tcc_ref,
                      g1_ref, b1_ref, g2_ref, b2_ref, g3_ref, b3_ref,
                      o_ref):
    """Whole-block kernel, everything VMEM resident.

    x_ref  : (N*H, W*Cin)   lane-dense input slab (f32)
    w1_ref : (W*Cin, W*P)   block-diagonal 1x1 conv1 weights (bf16)
    r_ref  : (3, NH, NH)    H(dy)-shift matrices for dy = -1, 0, +1 (bf16)
    m_ref  : (3, W*P, W*P)  conv2 weights with W(dx)-shift + 3x3 taps folded in (bf16)
    w3_ref : (W*P, W*Cout)  block-diagonal 1x1 conv3 weights (bf16)
    tcp/tcc: "same-channel" sum matrices (reduce per-(w,c) sums to per-channel,
             replicated back into the tiled column layout) (f32)
    g*/b*  : BN affine params pre-tiled to the (1, W*C) layout (f32)
    o_ref  : (N*H, W*Cout)  lane-dense output slab (f32)
    """

    def bn(h, tc_ref, g_ref, b_ref, relu):
        # Training-mode batchnorm folded into one scale/shift FMA per element.
        # One traversal of h yields sum and sum-of-squares; the tc matmul sums
        # the per-column partials into per-channel totals, already broadcast
        # back to every (w, c) column of that channel.
        tc = tc_ref[...]
        s1 = jnp.sum(jnp.dot(h, tc, preferred_element_type=jnp.float32),
                     axis=0, keepdims=True)
        s2 = jnp.sum(jnp.dot(h * h, tc, preferred_element_type=jnp.float32),
                     axis=0, keepdims=True)
        mean = s1 * inv_n
        var = s2 * inv_n - mean * mean               # biased batch variance
        scale = g_ref[...] * lax.rsqrt(var + EPS)
        shift = b_ref[...] - mean * scale
        hn = h * scale + shift
        return jnp.maximum(hn, 0.0) if relu else hn

    x = x_ref[...]                                   # (NH, W*Cin) f32
    xb = x.astype(jnp.bfloat16)

    # ---- conv1: 1x1 conv == one block-diagonal MXU matmul (K = W*Cin) ------
    h1 = jnp.dot(xb, w1_ref[...], preferred_element_type=jnp.float32)
    h1 = bn(h1, tcp_ref, g1_ref, b1_ref, relu=True)
    h1b = h1.astype(jnp.bfloat16)

    # ---- conv2: 3x3, stride 1, pad 1 ---------------------------------------
    # im2col folded into the weights: the dx (W) shifts + taps live inside
    # m_ref, the dy (H) shifts are the three row-shift matmuls.  3 + 3 small
    # matmuls, no padded scratch, no masked slices.
    acc = jnp.zeros(h1.shape, jnp.float32)
    for t in range(3):                               # dy = -1, 0, +1
        rows = jnp.dot(r_ref[t], h1b, preferred_element_type=jnp.float32)
        acc = acc + jnp.dot(rows.astype(jnp.bfloat16), m_ref[t],
                            preferred_element_type=jnp.float32)
    h2 = bn(acc, tcp_ref, g2_ref, b2_ref, relu=True)

    # ---- conv3: 1x1 conv == block-diagonal matmul, output already lane-dense
    h3 = jnp.dot(h2.astype(jnp.bfloat16), w3_ref[...],
                 preferred_element_type=jnp.float32)
    h3 = bn(h3, tcc_ref, g3_ref, b3_ref, relu=False)

    # ---- identity residual + final relu; full-width (128-lane) store -------
    o_ref[...] = jnp.maximum(h3 + x, 0.0)


def _build_kernel_operands(params, N, H, W, Cin):
    """Fold conv weights into block-diagonal / shift-folded matmul operands."""
    (w1, g1, b1, w2, g2, b2, w3, g3, b3) = params
    P = w1.shape[1]
    Cout = w3.shape[1]
    NH = N * H
    eye_w = jnp.eye(W, dtype=jnp.float32)

    # 1x1 convs: block-diagonal weights in the (row, W*C) layout.
    w1blk = jnp.kron(eye_w, w1.astype(jnp.float32))            # (W*Cin, W*P)
    w3blk = jnp.kron(eye_w, w3.astype(jnp.float32))            # (W*P, W*Cout)

    # 3x3 conv: per-dy matrix with the dx shift and the tap weights folded in.
    # tap(dy,dx) = R[dy] @ h1 @ S[dx],  S[dx][i, j] = 1 iff i == j + dx*P.
    m_list = []
    for dy in (-1, 0, 1):
        m = jnp.zeros((W * P, W * P), jnp.float32)
        for dx in (-1, 0, 1):
            s_dx = jnp.eye(W * P, k=-dx * P, dtype=jnp.float32)
            m = m + s_dx @ jnp.kron(eye_w, w2[dy + 1, dx + 1].astype(jnp.float32))
        m_list.append(m)
    m_stack = jnp.stack(m_list)                                # (3, W*P, W*P)

    # dy (H) shift matrices on the N*H row axis; zeroed border rows implement
    # the conv padding and block cross-batch bleed.
    a = np.arange(NH)
    r_list = []
    for dy in (-1, 0, 1):
        r = np.zeros((NH, NH), np.float32)
        valid = ((a % H) + dy >= 0) & ((a % H) + dy < H)
        r[a[valid], a[valid] + dy] = 1.0
        r_list.append(r)
    r_stack = jnp.asarray(np.stack(r_list))                    # (3, NH, NH)

    # "same channel class" sum matrices for the BN stat reduction.
    def chan_sum(width, c):
        idx = np.arange(width)
        return jnp.asarray(((idx[:, None] % c) == (idx[None, :] % c))
                           .astype(np.float32))

    tcp = chan_sum(W * P, P)                                   # (W*P, W*P)
    tcc = chan_sum(W * Cout, Cout)                             # (W*Cout, W*Cout)

    def tile_cparam(v, c):
        return jnp.tile(v.astype(jnp.float32).reshape(1, c), (1, W))

    bf16 = jnp.bfloat16
    return (w1blk.astype(bf16), r_stack.astype(bf16),
            m_stack.astype(bf16), w3blk.astype(bf16),
            tcp, tcc,
            tile_cparam(g1, P), tile_cparam(b1, P),
            tile_cparam(g2, P), tile_cparam(b2, P),
            tile_cparam(g3, Cout), tile_cparam(b3, Cout))


def bottleneck_cc1(x_nchw, params):
    (w1, _, _, _, _, _, w3, _, _) = params
    N, Cin, H, W = x_nchw.shape
    P = w1.shape[1]
    Cout = w3.shape[1]
    assert Cin == Cout, "identity residual requires inplanes == planes * 4"

    # NCHW -> NHWC -> lane-dense (N*H, W*C) slab (wrapper-side layout plumbing)
    x_slab = jnp.transpose(x_nchw, (0, 2, 3, 1)).reshape(N * H, W * Cin)
    operands = _build_kernel_operands(params, N, H, W, Cin)

    flops = 2 * N * H * W * (Cin * P + 9 * P * P + P * Cout)
    transcendentals = 2 * W * P + W * Cout            # rsqrt per BN column
    bytes_accessed = int(sum(int(np.prod(a.shape)) * a.dtype.itemsize
                             for a in (x_slab,) + operands)
                         + N * H * W * Cout * 4)

    kernel = functools.partial(bottleneck_kernel, 1.0 / float(N * H * W))
    vmem = pl.BlockSpec(memory_space=pltpu.MemorySpace.VMEM)
    out_slab = pl.pallas_call(
        kernel,
        out_shape=jax.ShapeDtypeStruct((N * H, W * Cout), jnp.float32),
        in_specs=[vmem] * (1 + len(operands)),
        out_specs=vmem,
        cost_estimate=pl.CostEstimate(flops=flops,
                                      transcendentals=transcendentals,
                                      bytes_accessed=bytes_accessed),
        compiler_params=pltpu.CompilerParams(vmem_limit_bytes=32 * 1024 * 1024),
    )(x_slab, *operands)

    # (N*H, W*Cout) -> NHWC -> NCHW
    return jnp.transpose(out_slab.reshape(N, H, W, Cout), (0, 3, 1, 2))


def reference_forward(x_nchw, params):
    """Pure-JAX reference of the same forward pass (for validation)."""
    (w1, g1, b1, w2, g2, b2, w3, g3, b3) = params
    x = jnp.transpose(x_nchw, (0, 2, 3, 1))
    dn = ("NHWC", "HWIO", "NHWC")

    def bn(h, g, b, relu):
        mean = jnp.mean(h, axis=(0, 1, 2), keepdims=True)
        var = jnp.mean((h - mean) ** 2, axis=(0, 1, 2), keepdims=True)
        hn = (h - mean) / jnp.sqrt(var + EPS)
        hn = hn * g.reshape(1, 1, 1, -1) + b.reshape(1, 1, 1, -1)
        return jnp.maximum(hn, 0.0) if relu else hn

    h = lax.conv_general_dilated(x, w1[None, None], (1, 1), "VALID",
                                 dimension_numbers=dn)
    h = bn(h, g1, b1, relu=True)
    h = lax.conv_general_dilated(h, w2, (1, 1), ((1, 1), (1, 1)),
                                 dimension_numbers=dn)
    h = bn(h, g2, b2, relu=True)
    h = lax.conv_general_dilated(h, w3[None, None], (1, 1), "VALID",
                                 dimension_numbers=dn)
    h = bn(h, g3, b3, relu=False)
    out = jnp.maximum(h + x, 0.0)
    return jnp.transpose(out, (0, 3, 1, 2))


def init_params(key, inplanes, planes, expansion=4):
    ks = jax.random.split(key, 9)
    cout = planes * expansion
    # conv weights: conv1/conv3 stored as (Cin, Cout); conv2 as HWIO (3,3,P,P)
    w1 = 0.2 * jax.random.normal(ks[0], (inplanes, planes), jnp.float32)
    w2 = 0.2 * jax.random.normal(ks[1], (3, 3, planes, planes), jnp.float32)
    w3 = 0.2 * jax.random.normal(ks[2], (planes, cout), jnp.float32)
    # batchnorm affine params (deterministic, non-trivial), stored as (1, C)
    g1 = (1.0 + 0.1 * jax.random.normal(ks[3], (1, planes))).astype(jnp.float32)
    b1 = (0.1 * jax.random.normal(ks[4], (1, planes))).astype(jnp.float32)
    g2 = (1.0 + 0.1 * jax.random.normal(ks[5], (1, planes))).astype(jnp.float32)
    b2 = (0.1 * jax.random.normal(ks[6], (1, planes))).astype(jnp.float32)
    g3 = (1.0 + 0.1 * jax.random.normal(ks[7], (1, cout))).astype(jnp.float32)
    b3 = (0.1 * jax.random.normal(ks[8], (1, cout))).astype(jnp.float32)
    return (w1, g1, b1, w2, g2, b2, w3, g3, b3)


if __name__ == "__main__":
    # Small shapes consistent with the module: planes=4, inplanes=planes*4=16
    N, inplanes, planes, H, W = 2, 16, 4, 8, 8
    key = jax.random.PRNGKey(0)
    kx, kp = jax.random.split(key)
    x = jax.random.normal(kx, (N, inplanes, H, W), jnp.float32)  # NCHW
    params = init_params(kp, inplanes, planes)

    out = jax.block_until_ready(bottleneck_cc1(x, params))
    ref = jax.block_until_ready(reference_forward(x, params))
    err = float(jnp.max(jnp.abs(out - ref)))
    assert out.shape == (N, planes * 4, H, W)
    # bf16 MXU inputs (f32 accumulation) bound the error to the ~1e-2 scale.
    assert err < 1e-1, f"max abs diff too large: {err}"
    print("KERNEL_OK")
</pallas_src>

<mosaic_0001>
module attributes {stable_mosaic.version = 11 : i64} {
  func.func @bottleneck_kernel(%arg0: memref<16x128xf32, #tpu.memory_space<vmem>>, %arg1: memref<128x32xbf16, #tpu.memory_space<vmem>>, %arg2: memref<3x16x16xbf16, #tpu.memory_space<vmem>>, %arg3: memref<3x32x32xbf16, #tpu.memory_space<vmem>>, %arg4: memref<32x128xbf16, #tpu.memory_space<vmem>>, %arg5: memref<32x32xf32, #tpu.memory_space<vmem>>, %arg6: memref<128x128xf32, #tpu.memory_space<vmem>>, %arg7: memref<1x32xf32, #tpu.memory_space<vmem>>, %arg8: memref<1x32xf32, #tpu.memory_space<vmem>>, %arg9: memref<1x32xf32, #tpu.memory_space<vmem>>, %arg10: memref<1x32xf32, #tpu.memory_space<vmem>>, %arg11: memref<1x128xf32, #tpu.memory_space<vmem>>, %arg12: memref<1x128xf32, #tpu.memory_space<vmem>>, %arg13: memref<16x128xf32, #tpu.memory_space<vmem>>) attributes {dimension_semantics = [], scalar_prefetch = 0 : i64, scratch_operands = 0 : i64, tpu.core_type = #tpu.core_type<tc>} {
    %c0 = arith.constant 0 : index
    %c0_0 = arith.constant 0 : index
    %0 = vector.load %arg0[%c0, %c0_0] : memref<16x128xf32, #tpu.memory_space<vmem>>, vector<16x128xf32>
    %1 = arith.truncf %0 : vector<16x128xf32> to vector<16x128xbf16>
    %c0_1 = arith.constant 0 : index
    %c0_2 = arith.constant 0 : index
    %2 = vector.load %arg1[%c0_1, %c0_2] : memref<128x32xbf16, #tpu.memory_space<vmem>>, vector<128x32xbf16>
    %cst = arith.constant dense<0.000000e+00> : vector<16x32xf32>
    %3 = tpu.matmul %1, %2, %cst {dimension_numbers = #tpu.dot_dimension_numbers<[1], [0], [0], [1], [0, 0, 1, 1], [], []>} : vector<16x128xbf16>, vector<128x32xbf16>, vector<16x32xf32> -> vector<16x32xf32>
    %c0_3 = arith.constant 0 : index
    %c0_4 = arith.constant 0 : index
    %4 = vector.load %arg5[%c0_3, %c0_4] : memref<32x32xf32, #tpu.memory_space<vmem>>, vector<32x32xf32>
    %cst_5 = arith.constant dense<0.000000e+00> : vector<16x32xf32>
    %5 = tpu.matmul %3, %4, %cst_5 {dimension_numbers = #tpu.dot_dimension_numbers<[1], [0], [0], [1], [0, 0, 1, 1], [], []>} : vector<16x32xf32>, vector<32x32xf32>, vector<16x32xf32> -> vector<16x32xf32>
    %cst_6 = arith.constant dense<0.000000e+00> : vector<32xf32>
    %6 = vector.multi_reduction <add>, %5, %cst_6 [0] : vector<16x32xf32> to vector<32xf32>
    %7 = vector.shape_cast %6 : vector<32xf32> to vector<1x32xf32>
    %8 = arith.mulf %3, %3 : vector<16x32xf32>
    %cst_7 = arith.constant dense<0.000000e+00> : vector<16x32xf32>
    %9 = tpu.matmul %8, %4, %cst_7 {dimension_numbers = #tpu.dot_dimension_numbers<[1], [0], [0], [1], [0, 0, 1, 1], [], []>} : vector<16x32xf32>, vector<32x32xf32>, vector<16x32xf32> -> vector<16x32xf32>
    %cst_8 = arith.constant dense<0.000000e+00> : vector<32xf32>
    %10 = vector.multi_reduction <add>, %9, %cst_8 [0] : vector<16x32xf32> to vector<32xf32>
    %11 = vector.shape_cast %10 : vector<32xf32> to vector<1x32xf32>
    %cst_9 = arith.constant 7.812500e-03 : f32
    %12 = vector.broadcast %cst_9 : f32 to vector<1x32xf32>
    %13 = arith.mulf %7, %12 : vector<1x32xf32>
    %cst_10 = arith.constant 7.812500e-03 : f32
    %14 = vector.broadcast %cst_10 : f32 to vector<1x32xf32>
    %15 = arith.mulf %11, %14 : vector<1x32xf32>
    %16 = arith.mulf %13, %13 : vector<1x32xf32>
    %17 = arith.subf %15, %16 : vector<1x32xf32>
    %c0_11 = arith.constant 0 : index
    %c0_12 = arith.constant 0 : index
    %18 = vector.load %arg7[%c0_11, %c0_12] : memref<1x32xf32, #tpu.memory_space<vmem>>, vector<1x32xf32>
    %cst_13 = arith.constant 9.99999974E-6 : f32
    %19 = vector.broadcast %cst_13 : f32 to vector<1x32xf32>
    %20 = arith.addf %17, %19 : vector<1x32xf32>
    %21 = math.rsqrt %20 : vector<1x32xf32>
    %22 = arith.mulf %18, %21 : vector<1x32xf32>
    %c0_14 = arith.constant 0 : index
    %c0_15 = arith.constant 0 : index
    %23 = vector.load %arg8[%c0_14, %c0_15] : memref<1x32xf32, #tpu.memory_space<vmem>>, vector<1x32xf32>
    %24 = arith.mulf %13, %22 : vector<1x32xf32>
    %25 = arith.subf %23, %24 : vector<1x32xf32>
    %26 = vector.broadcast %22 : vector<1x32xf32> to vector<16x32xf32>
    %27 = arith.mulf %3, %26 : vector<16x32xf32>
    %28 = vector.broadcast %25 : vector<1x32xf32> to vector<16x32xf32>
    %29 = arith.addf %27, %28 : vector<16x32xf32>
    %cst_16 = arith.constant 0.000000e+00 : f32
    %30 = vector.broadcast %cst_16 : f32 to vector<16x32xf32>
    %31 = arith.maximumf %29, %30 : vector<16x32xf32>
    %32 = arith.truncf %31 : vector<16x32xf32> to vector<16x32xbf16>
    %cst_17 = arith.constant 0.000000e+00 : f32
    %33 = vector.broadcast %cst_17 : f32 to vector<16x32xf32>
    %c0_18 = arith.constant 0 : index
    %c0_19 = arith.constant 0 : index
    %c0_20 = arith.constant 0 : index
    %34 = vector.load %arg2[%c0_18, %c0_19, %c0_20] : memref<3x16x16xbf16, #tpu.memory_space<vmem>>, vector<1x16x16xbf16>
    %35 = vector.shape_cast %34 : vector<1x16x16xbf16> to vector<16x16xbf16>
    %cst_21 = arith.constant dense<0.000000e+00> : vector<16x32xf32>
    %36 = tpu.matmul %35, %32, %cst_21 {dimension_numbers = #tpu.dot_dimension_numbers<[1], [0], [0], [1], [0, 0, 1, 1], [], []>} : vector<16x16xbf16>, vector<16x32xbf16>, vector<16x32xf32> -> vector<16x32xf32>
    %37 = arith.truncf %36 : vector<16x32xf32> to vector<16x32xbf16>
    %c0_22 = arith.constant 0 : index
    %c0_23 = arith.constant 0 : index
    %c0_24 = arith.constant 0 : index
    %38 = vector.load %arg3[%c0_22, %c0_23, %c0_24] : memref<3x32x32xbf16, #tpu.memory_space<vmem>>, vector<1x32x32xbf16>
    %39 = vector.shape_cast %38 : vector<1x32x32xbf16> to vector<32x32xbf16>
    %cst_25 = arith.constant dense<0.000000e+00> : vector<16x32xf32>
    %40 = tpu.matmul %37, %39, %cst_25 {dimension_numbers = #tpu.dot_dimension_numbers<[1], [0], [0], [1], [0, 0, 1, 1], [], []>} : vector<16x32xbf16>, vector<32x32xbf16>, vector<16x32xf32> -> vector<16x32xf32>
    %41 = arith.addf %33, %40 : vector<16x32xf32>
    %c1 = arith.constant 1 : index
    %c0_26 = arith.constant 0 : index
    %c0_27 = arith.constant 0 : index
    %42 = vector.load %arg2[%c1, %c0_26, %c0_27] : memref<3x16x16xbf16, #tpu.memory_space<vmem>>, vector<1x16x16xbf16>
    %43 = vector.shape_cast %42 : vector<1x16x16xbf16> to vector<16x16xbf16>
    %cst_28 = arith.constant dense<0.000000e+00> : vector<16x32xf32>
    %44 = tpu.matmul %43, %32, %cst_28 {dimension_numbers = #tpu.dot_dimension_numbers<[1], [0], [0], [1], [0, 0, 1, 1], [], []>} : vector<16x16xbf16>, vector<16x32xbf16>, vector<16x32xf32> -> vector<16x32xf32>
    %45 = arith.truncf %44 : vector<16x32xf32> to vector<16x32xbf16>
    %c1_29 = arith.constant 1 : index
    %c0_30 = arith.constant 0 : index
    %c0_31 = arith.constant 0 : index
    %46 = vector.load %arg3[%c1_29, %c0_30, %c0_31] : memref<3x32x32xbf16, #tpu.memory_space<vmem>>, vector<1x32x32xbf16>
    %47 = vector.shape_cast %46 : vector<1x32x32xbf16> to vector<32x32xbf16>
    %cst_32 = arith.constant dense<0.000000e+00> : vector<16x32xf32>
    %48 = tpu.matmul %45, %47, %cst_32 {dimension_numbers = #tpu.dot_dimension_numbers<[1], [0], [0], [1], [0, 0, 1, 1], [], []>} : vector<16x32xbf16>, vector<32x32xbf16>, vector<16x32xf32> -> vector<16x32xf32>
    %49 = arith.addf %41, %48 : vector<16x32xf32>
    %c2 = arith.constant 2 : index
    %c0_33 = arith.constant 0 : index
    %c0_34 = arith.constant 0 : index
    %50 = vector.load %arg2[%c2, %c0_33, %c0_34] : memref<3x16x16xbf16, #tpu.memory_space<vmem>>, vector<1x16x16xbf16>
    %51 = vector.shape_cast %50 : vector<1x16x16xbf16> to vector<16x16xbf16>
    %cst_35 = arith.constant dense<0.000000e+00> : vector<16x32xf32>
    %52 = tpu.matmul %51, %32, %cst_35 {dimension_numbers = #tpu.dot_dimension_numbers<[1], [0], [0], [1], [0, 0, 1, 1], [], []>} : vector<16x16xbf16>, vector<16x32xbf16>, vector<16x32xf32> -> vector<16x32xf32>
    %53 = arith.truncf %52 : vector<16x32xf32> to vector<16x32xbf16>
    %c2_36 = arith.constant 2 : index
    %c0_37 = arith.constant 0 : index
    %c0_38 = arith.constant 0 : index
    %54 = vector.load %arg3[%c2_36, %c0_37, %c0_38] : memref<3x32x32xbf16, #tpu.memory_space<vmem>>, vector<1x32x32xbf16>
    %55 = vector.shape_cast %54 : vector<1x32x32xbf16> to vector<32x32xbf16>
    %cst_39 = arith.constant dense<0.000000e+00> : vector<16x32xf32>
    %56 = tpu.matmul %53, %55, %cst_39 {dimension_numbers = #tpu.dot_dimension_numbers<[1], [0], [0], [1], [0, 0, 1, 1], [], []>} : vector<16x32xbf16>, vector<32x32xbf16>, vector<16x32xf32> -> vector<16x32xf32>
    %57 = arith.addf %49, %56 : vector<16x32xf32>
    %c0_40 = arith.constant 0 : index
    %c0_41 = arith.constant 0 : index
    %58 = vector.load %arg5[%c0_40, %c0_41] : memref<32x32xf32, #tpu.memory_space<vmem>>, vector<32x32xf32>
    %cst_42 = arith.constant dense<0.000000e+00> : vector<16x32xf32>
    %59 = tpu.matmul %57, %58, %cst_42 {dimension_numbers = #tpu.dot_dimension_numbers<[1], [0], [0], [1], [0, 0, 1, 1], [], []>} : vector<16x32xf32>, vector<32x32xf32>, vector<16x32xf32> -> vector<16x32xf32>
    %cst_43 = arith.constant dense<0.000000e+00> : vector<32xf32>
    %60 = vector.multi_reduction <add>, %59, %cst_43 [0] : vector<16x32xf32> to vector<32xf32>
    %61 = vector.shape_cast %60 : vector<32xf32> to vector<1x32xf32>
    %62 = arith.mulf %57, %57 : vector<16x32xf32>
    %cst_44 = arith.constant dense<0.000000e+00> : vector<16x32xf32>
    %63 = tpu.matmul %62, %58, %cst_44 {dimension_numbers = #tpu.dot_dimension_numbers<[1], [0], [0], [1], [0, 0, 1, 1], [], []>} : vector<16x32xf32>, vector<32x32xf32>, vector<16x32xf32> -> vector<16x32xf32>
    %cst_45 = arith.constant dense<0.000000e+00> : vector<32xf32>
    %64 = vector.multi_reduction <add>, %63, %cst_45 [0] : vector<16x32xf32> to vector<32xf32>
    %65 = vector.shape_cast %64 : vector<32xf32> to vector<1x32xf32>
    %cst_46 = arith.constant 7.812500e-03 : f32
    %66 = vector.broadcast %cst_46 : f32 to vector<1x32xf32>
    %67 = arith.mulf %61, %66 : vector<1x32xf32>
    %cst_47 = arith.constant 7.812500e-03 : f32
    %68 = vector.broadcast %cst_47 : f32 to vector<1x32xf32>
    %69 = arith.mulf %65, %68 : vector<1x32xf32>
    %70 = arith.mulf %67, %67 : vector<1x32xf32>
    %71 = arith.subf %69, %70 : vector<1x32xf32>
    %c0_48 = arith.constant 0 : index
    %c0_49 = arith.constant 0 : index
    %72 = vector.load %arg9[%c0_48, %c0_49] : memref<1x32xf32, #tpu.memory_space<vmem>>, vector<1x32xf32>
    %cst_50 = arith.constant 9.99999974E-6 : f32
    %73 = vector.broadcast %cst_50 : f32 to vector<1x32xf32>
    %74 = arith.addf %71, %73 : vector<1x32xf32>
    %75 = math.rsqrt %74 : vector<1x32xf32>
    %76 = arith.mulf %72, %75 : vector<1x32xf32>
    %c0_51 = arith.constant 0 : index
    %c0_52 = arith.constant 0 : index
    %77 = vector.load %arg10[%c0_51, %c0_52] : memref<1x32xf32, #tpu.memory_space<vmem>>, vector<1x32xf32>
    %78 = arith.mulf %67, %76 : vector<1x32xf32>
    %79 = arith.subf %77, %78 : vector<1x32xf32>
    %80 = vector.broadcast %76 : vector<1x32xf32> to vector<16x32xf32>
    %81 = arith.mulf %57, %80 : vector<16x32xf32>
    %82 = vector.broadcast %79 : vector<1x32xf32> to vector<16x32xf32>
    %83 = arith.addf %81, %82 : vector<16x32xf32>
    %cst_53 = arith.constant 0.000000e+00 : f32
    %84 = vector.broadcast %cst_53 : f32 to vector<16x32xf32>
    %85 = arith.maximumf %83, %84 : vector<16x32xf32>
    %86 = arith.truncf %85 : vector<16x32xf32> to vector<16x32xbf16>
    %c0_54 = arith.constant 0 : index
    %c0_55 = arith.constant 0 : index
    %87 = vector.load %arg4[%c0_54, %c0_55] : memref<32x128xbf16, #tpu.memory_space<vmem>>, vector<32x128xbf16>
    %cst_56 = arith.constant dense<0.000000e+00> : vector<16x128xf32>
    %88 = tpu.matmul %86, %87, %cst_56 {dimension_numbers = #tpu.dot_dimension_numbers<[1], [0], [0], [1], [0, 0, 1, 1], [], []>} : vector<16x32xbf16>, vector<32x128xbf16>, vector<16x128xf32> -> vector<16x128xf32>
    %c0_57 = arith.constant 0 : index
    %c0_58 = arith.constant 0 : index
    %89 = vector.load %arg6[%c0_57, %c0_58] : memref<128x128xf32, #tpu.memory_space<vmem>>, vector<128x128xf32>
    %cst_59 = arith.constant dense<0.000000e+00> : vector<16x128xf32>
    %90 = tpu.matmul %88, %89, %cst_59 {dimension_numbers = #tpu.dot_dimension_numbers<[1], [0], [0], [1], [0, 0, 1, 1], [], []>} : vector<16x128xf32>, vector<128x128xf32>, vector<16x128xf32> -> vector<16x128xf32>
    %cst_60 = arith.constant dense<0.000000e+00> : vector<128xf32>
    %91 = vector.multi_reduction <add>, %90, %cst_60 [0] : vector<16x128xf32> to vector<128xf32>
    %92 = vector.shape_cast %91 : vector<128xf32> to vector<1x128xf32>
    %93 = arith.mulf %88, %88 : vector<16x128xf32>
    %cst_61 = arith.constant dense<0.000000e+00> : vector<16x128xf32>
    %94 = tpu.matmul %93, %89, %cst_61 {dimension_numbers = #tpu.dot_dimension_numbers<[1], [0], [0], [1], [0, 0, 1, 1], [], []>} : vector<16x128xf32>, vector<128x128xf32>, vector<16x128xf32> -> vector<16x128xf32>
    %cst_62 = arith.constant dense<0.000000e+00> : vector<128xf32>
    %95 = vector.multi_reduction <add>, %94, %cst_62 [0] : vector<16x128xf32> to vector<128xf32>
    %96 = vector.shape_cast %95 : vector<128xf32> to vector<1x128xf32>
    %cst_63 = arith.constant 7.812500e-03 : f32
    %97 = vector.broadcast %cst_63 : f32 to vector<1x128xf32>
    %98 = arith.mulf %92, %97 : vector<1x128xf32>
    %cst_64 = arith.constant 7.812500e-03 : f32
    %99 = vector.broadcast %cst_64 : f32 to vector<1x128xf32>
    %100 = arith.mulf %96, %99 : vector<1x128xf32>
    %101 = arith.mulf %98, %98 : vector<1x128xf32>
    %102 = arith.subf %100, %101 : vector<1x128xf32>
    %c0_65 = arith.constant 0 : index
    %c0_66 = arith.constant 0 : index
    %103 = vector.load %arg11[%c0_65, %c0_66] : memref<1x128xf32, #tpu.memory_space<vmem>>, vector<1x128xf32>
    %cst_67 = arith.constant 9.99999974E-6 : f32
    %104 = vector.broadcast %cst_67 : f32 to vector<1x128xf32>
    %105 = arith.addf %102, %104 : vector<1x128xf32>
    %106 = math.rsqrt %105 : vector<1x128xf32>
    %107 = arith.mulf %103, %106 : vector<1x128xf32>
    %c0_68 = arith.constant 0 : index
    %c0_69 = arith.constant 0 : index
    %108 = vector.load %arg12[%c0_68, %c0_69] : memref<1x128xf32, #tpu.memory_space<vmem>>, vector<1x128xf32>
    %109 = arith.mulf %98, %107 : vector<1x128xf32>
    %110 = arith.subf %108, %109 : vector<1x128xf32>
    %111 = vector.broadcast %107 : vector<1x128xf32> to vector<16x128xf32>
    %112 = arith.mulf %88, %111 : vector<16x128xf32>
    %113 = vector.broadcast %110 : vector<1x128xf32> to vector<16x128xf32>
    %114 = arith.addf %112, %113 : vector<16x128xf32>
    %115 = arith.addf %114, %0 : vector<16x128xf32>
    %cst_70 = arith.constant 0.000000e+00 : f32
    %116 = vector.broadcast %cst_70 : f32 to vector<16x128xf32>
    %117 = arith.maximumf %115, %116 : vector<16x128xf32>
    %c0_71 = arith.constant 0 : index
    %c0_72 = arith.constant 0 : index
    %118 = vector.load %arg13[%c0_71, %c0_72] : memref<16x128xf32, #tpu.memory_space<vmem>>, vector<16x128xf32>
    tpu.vector_store %arg13[%c0_71, %c0_72], %117 {strides = array<i32>} : memref<16x128xf32, #tpu.memory_space<vmem>>, vector<16x128xf32>,
    return
  }
}

</mosaic_0001>

<llo_original>
// kernel: tpu_custom_call.1
$region0: #{tpu_custom_call.1}
  #allocation0 [shape = 'u32[]', space=smem, size = 0x4, offset = 0x4, fixed_abs, tag = 'smem constant byte address 0x4 - core index']
  #allocation1 [shape = 'u32[144,128]{1,0:T(1,128)}', space=vmem, size = 0x12000, scoped, tag = 'internal scratch']
  %s0 = inlined_call_operand.hbm [shape: f32[16,128], index: 0, kind: input, shape index: {}]
  %s1 = inlined_call_operand.vmem [shape: bf16[128,32], index: 1, kind: input, shape index: {}]
  %s2 = inlined_call_operand.hbm [shape: bf16[3,16,16], index: 2, kind: input, shape index: {}]
  %s3 = inlined_call_operand.vmem [shape: bf16[3,32,32], index: 3, kind: input, shape index: {}]
  %s4 = inlined_call_operand.hbm [shape: bf16[32,128], index: 4, kind: input, shape index: {}]
  %s5 = inlined_call_operand.vmem [shape: f32[32,32], index: 5, kind: input, shape index: {}]
  %s6 = inlined_call_operand.hbm [shape: f32[128,128], index: 6, kind: input, shape index: {}]
  %s7 = inlined_call_operand.vmem [shape: f32[1,32], index: 7, kind: input, shape index: {}]
  %s8 = inlined_call_operand.vmem [shape: f32[1,32], index: 8, kind: input, shape index: {}]
  %s9 = inlined_call_operand.vmem [shape: f32[1,32], index: 9, kind: input, shape index: {}]
  %s10 = inlined_call_operand.vmem [shape: f32[1,32], index: 10, kind: input, shape index: {}]
  %s11 = inlined_call_operand.vmem [shape: f32[1,128], index: 11, kind: input, shape index: {}]
  %s12 = inlined_call_operand.vmem [shape: f32[1,128], index: 12, kind: input, shape index: {}]
  %s13 = inlined_call_operand.hbm [shape: f32[16,128], index: 13, kind: output, shape index: {}]
  %s14 = sld [smem:[#allocation0]]
  $region78: #{tpu_custom_call.1} parent=0
    _
  %s16 = ssub.s32 1, %s14
  %s17 = scalar_select 0, %s16, %s14
  $region1: #{tpu_custom_call.1} parent=0
    #allocation2 [shape = 'u8[8192]{0}', space=vmem, size = 0x2000, scoped, tag = 'input window, operand 0, single buffered']
    #allocation3 [shape = 's32[1]{0}', space=sflag, size = 0x4, scoped, tag = 'scoped memory for tpu_custom_call.1']
    #allocation4 [shape = 's32[1]{0}', space=sflag, size = 0x4, scoped, tag = 'scoped memory for tpu_custom_call.1']
    #allocation5 [shape = 'u8[12288]{0}', space=vmem, size = 0x3000, scoped, tag = 'input window, operand 2, single buffered']
    #allocation6 [shape = 's32[1]{0}', space=sflag, size = 0x4, scoped, tag = 'scoped memory for tpu_custom_call.1']
    #allocation7 [shape = 'u8[8192]{0}', space=vmem, size = 0x2000, scoped, tag = 'input window, operand 4, single buffered']
    #allocation8 [shape = 'u8[65536]{0}', space=vmem, size = 0x10000, scoped, tag = 'input window, operand 6, single buffered']
    #allocation9 [shape = 's32[1]{0}', space=sflag, size = 0x4, scoped, tag = 'scoped memory for tpu_custom_call.1']
    #allocation10 [shape = 'u8[8192]{0}', space=vmem, size = 0x2000, scoped, tag = 'output window, operand 0, single buffered']
    %18 = vsyncpa [#allocation3], 0
    %19 = vsyncpa [#allocation6], 0
    %20 = vsyncpa [#allocation9], 0
    %21 = vsyncpa [#allocation4], 0
    // Predicated region
    $region2: #{tpu_custom_call.1} parent=1 // pred_check
      _
    $region3: #{tpu_custom_call.1} parent=1 // pred_check_branch
      %23 = sbr.rel (0) target = $region5
    $region4: #{tpu_custom_call.1} parent=1 // pred_region
      %s25 = ssub.s32 256, 256
      %26 = vsyncadd [#allocation3], %s25
      %s27 = sshll.u32 [#allocation2], 4
      %s28 = int_to_ptr.vmem [resolvable:$true] %s27
      %33 = dma.hbm_to_vmem [thread:$0]  %s0, 256, %s28, [#allocation3], 128, 128, 8
    $region5: #{tpu_custom_call.1} parent=1 // pred_fallthru
      _
    // Predicated region
    $region6: #{tpu_custom_call.1} parent=1 // pred_check
      _
    $region7: #{tpu_custom_call.1} parent=1 // pred_check_branch
      %35 = sbr.rel (0) target = $region9
    $region8: #{tpu_custom_call.1} parent=1 // pred_region
      _
    $region9: #{tpu_custom_call.1} parent=1 // pred_fallthru
      _
    // Predicated region
    $region10: #{tpu_custom_call.1} parent=1 // pred_check
      _
    $region11: #{tpu_custom_call.1} parent=1 // pred_check_branch
      %37 = sbr.rel (0) target = $region13
    $region12: #{tpu_custom_call.1} parent=1 // pred_region
      %s39 = ssub.s32 384, 384
      %40 = vsyncadd [#allocation6], %s39
      %s41 = sshll.u32 [#allocation5], 4
      %s42 = int_to_ptr.vmem [resolvable:$true] %s41
      %47 = dma.hbm_to_vmem [thread:$0]  %s2, 384, %s42, [#allocation6], 64, 64, 4
    $region13: #{tpu_custom_call.1} parent=1 // pred_fallthru
      _
    // Predicated region
    $region14: #{tpu_custom_call.1} parent=1 // pred_check
      _
    $region15: #{tpu_custom_call.1} parent=1 // pred_check_branch
      %49 = sbr.rel (0) target = $region17
    $region16: #{tpu_custom_call.1} parent=1 // pred_region
      _
    $region17: #{tpu_custom_call.1} parent=1 // pred_fallthru
      _
    // Predicated region
    $region18: #{tpu_custom_call.1} parent=1 // pred_check
      _
    $region19: #{tpu_custom_call.1} parent=1 // pred_check_branch
      %51 = sbr.rel (0) target = $region21
    $region20: #{tpu_custom_call.1} parent=1 // pred_region
      %s53 = ssub.s32 256, 256
      %54 = vsyncadd [#allocation6], %s53
      %s55 = sshll.u32 [#allocation7], 4
      %s56 = int_to_ptr.vmem [resolvable:$true] %s55
      %61 = dma.hbm_to_vmem [thread:$0]  %s4, 256, %s56, [#allocation6], 64, 64, 4
    $region21: #{tpu_custom_call.1} parent=1 // pred_fallthru
      _
    // Predicated region
    $region22: #{tpu_custom_call.1} parent=1 // pred_check
      _
    $region23: #{tpu_custom_call.1} parent=1 // pred_check_branch
      %63 = sbr.rel (0) target = $region25
    $region24: #{tpu_custom_call.1} parent=1 // pred_region
      _
    $region25: #{tpu_custom_call.1} parent=1 // pred_fallthru
      _
    // Predicated region
    $region26: #{tpu_custom_call.1} parent=1 // pred_check
      _
    $region27: #{tpu_custom_call.1} parent=1 // pred_check_branch
      %65 = sbr.rel (0) target = $region29
    $region28: #{tpu_custom_call.1} parent=1 // pred_region
      %s67 = ssub.s32 2048, 2048
      %68 = vsyncadd [#allocation9], %s67
      %s69 = sshll.u32 [#allocation8], 4
      %s70 = int_to_ptr.vmem [resolvable:$true] %s69
      %75 = dma.hbm_to_vmem [thread:$0]  %s6, 2048, %s70, [#allocation9], 128, 128, 8
    $region29: #{tpu_custom_call.1} parent=1 // pred_fallthru
      _
    // Predicated region
    $region30: #{tpu_custom_call.1} parent=1 // pred_check
      _
    $region31: #{tpu_custom_call.1} parent=1 // pred_check_branch
      %77 = sbr.rel (0) target = $region33
    $region32: #{tpu_custom_call.1} parent=1 // pred_region
      _
    $region33: #{tpu_custom_call.1} parent=1 // pred_fallthru
      _
    // Predicated region
    $region34: #{tpu_custom_call.1} parent=1 // pred_check
      _
    $region35: #{tpu_custom_call.1} parent=1 // pred_check_branch
      %79 = sbr.rel (0) target = $region37
    $region36: #{tpu_custom_call.1} parent=1 // pred_region
      _
    $region37: #{tpu_custom_call.1} parent=1 // pred_fallthru
      _
    // Predicated region
    $region38: #{tpu_custom_call.1} parent=1 // pred_check
      _
    $region39: #{tpu_custom_call.1} parent=1 // pred_check_branch
      %81 = sbr.rel (0) target = $region41
    $region40: #{tpu_custom_call.1} parent=1 // pred_region
      _
    $region41: #{tpu_custom_call.1} parent=1 // pred_fallthru
      _
    // Predicated region
    $region42: #{tpu_custom_call.1} parent=1 // pred_check
      _
    $region43: #{tpu_custom_call.1} parent=1 // pred_check_branch
      %83 = sbr.rel (0) target = $region45
    $region44: #{tpu_custom_call.1} parent=1 // pred_region
      _
    $region45: #{tpu_custom_call.1} parent=1 // pred_fallthru
      _
    // Predicated region
    $region46: #{tpu_custom_call.1} parent=1 // pred_check
      _
    $region47: #{tpu_custom_call.1} parent=1 // pred_check_branch
      %85 = sbr.rel (0) target = $region49
    $region48: #{tpu_custom_call.1} parent=1 // pred_region
      _
    $region49: #{tpu_custom_call.1} parent=1 // pred_fallthru
      _
    // Predicated region
    $region50: #{tpu_custom_call.1} parent=1 // pred_check
      _
    $region51: #{tpu_custom_call.1} parent=1 // pred_check_branch
      %87 = sbr.rel (0) target = $region53
    $region52: #{tpu_custom_call.1} parent=1 // pred_region
      _
    $region53: #{tpu_custom_call.1} parent=1 // pred_fallthru
      _
    // Predicated region
    $region54: #{tpu_custom_call.1} parent=1 // pred_check
      _
    $region55: #{tpu_custom_call.1} parent=1 // pred_check_branch
      %89 = sbr.rel (0) target = $region57
    $region56: #{tpu_custom_call.1} parent=1 // pred_region
      %90 = dma.done [#allocation3], 256
    $region57: #{tpu_custom_call.1} parent=1 // pred_fallthru
      _
    // Predicated region
    $region58: #{tpu_custom_call.1} parent=1 // pred_check
      _
    $region59: #{tpu_custom_call.1} parent=1 // pred_check_branch
      %92 = sbr.rel (0) target = $region61
    $region60: #{tpu_custom_call.1} parent=1 // pred_region
      %93 = dma.done [#allocation6], 384
    $region61: #{tpu_custom_call.1} parent=1 // pred_fallthru
      _
    // Predicated region
    $region62: #{tpu_custom_call.1} parent=1 // pred_check
      _
    $region63: #{tpu_custom_call.1} parent=1 // pred_check_branch
      %95 = sbr.rel (0) target = $region65
    $region64: #{tpu_custom_call.1} parent=1 // pred_region
      %96 = dma.done [#allocation6], 256
    $region65: #{tpu_custom_call.1} parent=1 // pred_fallthru
      _
    // Predicated region
    $region66: #{tpu_custom_call.1} parent=1 // pred_check
      _
    $region67: #{tpu_custom_call.1} parent=1 // pred_check_branch
      %98 = sbr.rel (0) target = $region69
    $region68: #{tpu_custom_call.1} parent=1 // pred_region
      %99 = dma.done [#allocation9], 2048
    $region69: #{tpu_custom_call.1} parent=1 // pred_fallthru
      _
    %v101 = vld [vmem:[#allocation2] sm:$0xff]
    %v102 = vld [vmem:[#allocation2 + $0x8] sm:$0xff]
    %v103 = vpack.c.bf16 %v102, %v101
    %v104 = vld [vmem:[%s1] sm:$0xf]
    %v105 = vld [vmem:[%s1 + $0x4] sm:$0xf]
    %v106 = vld [vmem:[%s1 + $0x8] sm:$0xf]
    %v107 = vld [vmem:[%s1 + $0xc] sm:$0xf]
    %v108 = vld [vmem:[%s1 + $0x10] sm:$0xf]
    %v109 = vld [vmem:[%s1 + $0x14] sm:$0xf]
    %v110 = vld [vmem:[%s1 + $0x18] sm:$0xf]
    %v111 = vld [vmem:[%s1 + $0x1c] sm:$0xf]
    %v112 = vld [vmem:[%s1 + $0x20] sm:$0xf]
    %v113 = vld [vmem:[%s1 + $0x24] sm:$0xf]
    %v114 = vld [vmem:[%s1 + $0x28] sm:$0xf]
    %v115 = vld [vmem:[%s1 + $0x2c] sm:$0xf]
    %v116 = vld [vmem:[%s1 + $0x30] sm:$0xf]
    %v117 = vld [vmem:[%s1 + $0x34] sm:$0xf]
    %v118 = vld [vmem:[%s1 + $0x38] sm:$0xf]
    %v119 = vld [vmem:[%s1 + $0x3c] sm:$0xf]
    %v136 = vunpack.c.l.b16 %v104
    %v137 = vunpack.c.l.b16 %v105
    %v138 = vunpack.c.l.b16 %v106
    %v139 = vunpack.c.l.b16 %v107
    %v140 = vunpack.c.l.b16 %v108
    %v141 = vunpack.c.l.b16 %v109
    %v142 = vunpack.c.l.b16 %v110
    %v143 = vunpack.c.l.b16 %v111
    %v144 = vunpack.c.l.b16 %v112
    %v145 = vunpack.c.l.b16 %v113
    %v146 = vunpack.c.l.b16 %v114
    %v147 = vunpack.c.l.b16 %v115
    %v148 = vunpack.c.l.b16 %v116
    %v149 = vunpack.c.l.b16 %v117
    %v150 = vunpack.c.l.b16 %v118
    %v151 = vunpack.c.l.b16 %v119
    %v152 = vpack.c.b16 %v137, %v136
    %v153 = vpack.c.b16 %v139, %v138
    %v154 = vpack.c.b16 %v141, %v140
    %v155 = vpack.c.b16 %v143, %v142
    %v156 = vpack.c.b16 %v145, %v144
    %v157 = vpack.c.b16 %v147, %v146
    %v158 = vpack.c.b16 %v149, %v148
    %v159 = vpack.c.b16 %v151, %v150
    %168 = vmatprep.subr.bf16.mxu0 0
    %169 = vmatpush1.bf16.msra.mxu0 %v152
    %170 = vmatprep.subr.bf16.mxu0 0
    %171 = vmatpush1.bf16.msra.mxu0 %v153
    %172 = vmatprep.subr.bf16.mxu0 0
    %173 = vmatpush1.bf16.msra.mxu0 %v154
    %174 = vmatprep.subr.bf16.mxu0 0
    %175 = vmatpush1.bf16.msra.mxu0 %v155
    %176 = vmatprep.subr.bf16.mxu0 0
    %177 = vmatpush1.bf16.msra.mxu0 %v156
    %178 = vmatprep.subr.bf16.mxu0 0
    %179 = vmatpush1.bf16.msra.mxu0 %v157
    %180 = vmatprep.subr.bf16.mxu0 0
    %181 = vmatpush1.bf16.msra.mxu0 %v158
    %182 = vmatprep.subr.bf16.mxu0 0
    %183 = vmatpush1.bf16.msra.mxu0 %v159
    %184 = vmatprep.subr.bf16.mxu0 0
    %185 = vmatpush1.bf16.msra.mxu0 0
    %186 = vmatprep.subr.bf16.mxu0 0
    %187 = vmatpush1.bf16.msra.mxu0 0
    %188 = vmatprep.subr.bf16.mxu0 0
    %189 = vmatpush1.bf16.msra.mxu0 0
    %190 = vmatprep.subr.bf16.mxu0 0
    %191 = vmatpush1.bf16.msra.mxu0 0
    %192 = vmatprep.subr.bf16.mxu0 0
    %193 = vmatpush1.bf16.msra.mxu0 0
    %194 = vmatprep.subr.bf16.mxu0 0
    %195 = vmatpush1.bf16.msra.mxu0 0
    %196 = vmatprep.subr.bf16.mxu0 0
    %197 = vmatpush1.bf16.msra.mxu0 0
    %198 = vmatprep.subr.bf16.mxu0 0
    %199 = vmatpush1.bf16.msra.mxu0 0
    %200 = vmatprep.mubr.bf16.mxu0 0
    %201 = vmatmul.mubr.bf16.gmra.mrb[0].mxu0 %v103
    %v202 = vpop.f32.mrb[0].mxu0
    %v203 = vadd.f32 0.0, %v202
    %v204 = vpop.f32.mrb[0].mxu0
    %v205 = vpop.f32.mrb[0].mxu0
    %v206 = vadd.f32 0.0, %v205
    %v207 = vpop.f32.mrb[0].mxu0
    %208 = vdwg.mxu0
    %v209 = vld [vmem:[%s5] sm:$0xff]
    %v210 = vld [vmem:[%s5 + $0x8] sm:$0xff]
    %v211 = vld [vmem:[%s5 + $0x10] sm:$0xff]
    %v212 = vld [vmem:[%s5 + $0x18] sm:$0xff]
    %vm213 = vcmask 261120
    %v215 = vsel %vm213, %v203, 0
    %v218 = vsel %vm213, %v206, 0
    %220 = vmatprep.subr.mxu0 0.0
    %221 = vmatpush1.msra.mxu0 %v209
    %222 = vmatprep.subr.mxu0 0.0
    %223 = vmatpush1.msra.mxu0 %v210
    %224 = vmatprep.subr.mxu0 0.0
    %225 = vmatpush1.msra.mxu0 %v211
    %226 = vmatprep.subr.mxu0 0.0
    %227 = vmatpush1.msra.mxu0 %v212
    %228 = vmatprep.subr.mxu0 0.0
    %229 = vmatpush1.msra.mxu0 0.0
    %230 = vmatprep.subr.mxu0 0.0
    %231 = vmatpush1.msra.mxu0 0.0
    %232 = vmatprep.subr.mxu0 0.0
    %233 = vmatpush1.msra.mxu0 0.0
    %234 = vmatprep.subr.mxu0 0.0
    %235 = vmatpush1.msra.mxu0 0.0
    %236 = vmatprep.subr.mxu0 0.0
    %237 = vmatpush1.msra.mxu0 0.0
    %238 = vmatprep.subr.mxu0 0.0
    %239 = vmatpush1.msra.mxu0 0.0
    %240 = vmatprep.subr.mxu0 0.0
    %241 = vmatpush1.msra.mxu0 0.0
    %242 = vmatprep.subr.mxu0 0.0
    %243 = vmatpush1.msra.mxu0 0.0
    %244 = vmatprep.subr.mxu0 0.0
    %245 = vmatpush1.msra.mxu0 0.0
    %246 = vmatprep.subr.mxu0 0.0
    %247 = vmatpush1.msra.mxu0 0.0
    %248 = vmatprep.subr.mxu0 0.0
    %249 = vmatpush1.msra.mxu0 0.0
    %250 = vmatprep.subr.mxu0 0.0
    %251 = vmatpush1.msra.mxu0 0.0
    %252 = vmatprep.subr.mxu0 0.0
    %253 = vmatpush1.msra.mxu0 0.0
    %254 = vmatprep.subr.mxu0 0.0
    %255 = vmatpush1.msra.mxu0 0.0
    %256 = vmatprep.subr.mxu0 0.0
    %257 = vmatpush1.msra.mxu0 0.0
    %258 = vmatprep.subr.mxu0 0.0
    %259 = vmatpush1.msra.mxu0 0.0
    %260 = vmatprep.subr.mxu0 0.0
    %261 = vmatpush1.msra.mxu0 0.0
    %262 = vmatprep.subr.mxu0 0.0
    %263 = vmatpush1.msra.mxu0 0.0
    %264 = vmatprep.subr.mxu0 0.0
    %265 = vmatpush1.msra.mxu0 0.0
    %266 = vmatprep.subr.mxu0 0.0
    %267 = vmatpush1.msra.mxu0 0.0
    %268 = vmatprep.subr.mxu0 0.0
    %269 = vmatpush1.msra.mxu0 0.0
    %270 = vmatprep.subr.mxu0 0.0
    %271 = vmatpush1.msra.mxu0 0.0
    %272 = vmatprep.subr.mxu0 0.0
    %273 = vmatpush1.msra.mxu0 0.0
    %274 = vmatprep.subr.mxu0 0.0
    %275 = vmatpush1.msra.mxu0 0.0
    %276 = vmatprep.subr.mxu0 0.0
    %277 = vmatpush1.msra.mxu0 0.0
    %278 = vmatprep.subr.mxu0 0.0
    %279 = vmatpush1.msra.mxu0 0.0
    %280 = vmatprep.subr.mxu0 0.0
    %281 = vmatpush1.msra.mxu0 0.0
    %282 = vmatprep.subr.mxu0 0.0
    %283 = vmatpush1.msra.mxu0 0.0
    %284 = vmatprep.mubr.f32.mxu0 0.0
    %285 = vmatmul.mubr.f32.gmra.mrb[0].mxu0 %v215
    %v286 = vpop.f32.mrb[0].mxu0
    %v287 = vadd.f32 0.0, %v286
    %v288 = vpop.f32.mrb[0].mxu0
    %289 = vmatprep.mubr.f32.mxu0 0.0
    %290 = vmatmul.mubr.f32.gmra.mrb[0].mxu0 %v218
    %v291 = vpop.f32.mrb[0].mxu0
    %v292 = vadd.f32 0.0, %v291
    %v293 = vpop.f32.mrb[0].mxu0
    %294 = vdwg.mxu0
    %v295 = vsel %vm213, %v287, 0.0
    %v296 = vsel %vm213, %v292, 0.0
    %v297 = vadd.f32 %v295, %v296
    %v298 = vrot.slane %v297, 4
    %v299 = vadd.f32 %v297, %v298
    %v300 = vrot.slane %v299, 2
    %v301 = vadd.f32 %v299, %v300
    %v302 = vrot.slane %v301, 1
    %v303 = vadd.f32 %v301, %v302
    %v304 = vmul.f32 %v203, %v203
    %v305 = vmul.f32 %v206, %v206
    %v307 = vsel %vm213, %v304, 0
    %v310 = vsel %vm213, %v305, 0
    %312 = vmatprep.subr.mxu0 0.0
    %313 = vmatpush1.msra.mxu0 %v209
    %314 = vmatprep.subr.mxu0 0.0
    %315 = vmatpush1.msra.mxu0 %v210
    %316 = vmatprep.subr.mxu0 0.0
    %317 = vmatpush1.msra.mxu0 %v211
    %318 = vmatprep.subr.mxu0 0.0
    %319 = vmatpush1.msra.mxu0 %v212
    %320 = vmatprep.subr.mxu0 0.0
    %321 = vmatpush1.msra.mxu0 0.0
    %322 = vmatprep.subr.mxu0 0.0
    %323 = vmatpush1.msra.mxu0 0.0
    %324 = vmatprep.subr.mxu0 0.0
    %325 = vmatpush1.msra.mxu0 0.0
    %326 = vmatprep.subr.mxu0 0.0
    %327 = vmatpush1.msra.mxu0 0.0
    %328 = vmatprep.subr.mxu0 0.0
    %329 = vmatpush1.msra.mxu0 0.0
    %330 = vmatprep.subr.mxu0 0.0
    %331 = vmatpush1.msra.mxu0 0.0
    %332 = vmatprep.subr.mxu0 0.0
    %333 = vmatpush1.msra.mxu0 0.0
    %334 = vmatprep.subr.mxu0 0.0
    %335 = vmatpush1.msra.mxu0 0.0
    %336 = vmatprep.subr.mxu0 0.0
    %337 = vmatpush1.msra.mxu0 0.0
    %338 = vmatprep.subr.mxu0 0.0
    %339 = vmatpush1.msra.mxu0 0.0
    %340 = vmatprep.subr.mxu0 0.0
    %341 = vmatpush1.msra.mxu0 0.0
    %342 = vmatprep.subr.mxu0 0.0
    %343 = vmatpush1.msra.mxu0 0.0
    %344 = vmatprep.subr.mxu0 0.0
    %345 = vmatpush1.msra.mxu0 0.0
    %346 = vmatprep.subr.mxu0 0.0
    %347 = vmatpush1.msra.mxu0 0.0
    %348 = vmatprep.subr.mxu0 0.0
    %349 = vmatpush1.msra.mxu0 0.0
    %350 = vmatprep.subr.mxu0 0.0
    %351 = vmatpush1.msra.mxu0 0.0
    %352 = vmatprep.subr.mxu0 0.0
    %353 = vmatpush1.msra.mxu0 0.0
    %354 = vmatprep.subr.mxu0 0.0
    %355 = vmatpush1.msra.mxu0 0.0
    %356 = vmatprep.subr.mxu0 0.0
    %357 = vmatpush1.msra.mxu0 0.0
    %358 = vmatprep.subr.mxu0 0.0
    %359 = vmatpush1.msra.mxu0 0.0
    %360 = vmatprep.subr.mxu0 0.0
    %361 = vmatpush1.msra.mxu0 0.0
    %362 = vmatprep.subr.mxu0 0.0
    %363 = vmatpush1.msra.mxu0 0.0
    %364 = vmatprep.subr.mxu0 0.0
    %365 = vmatpush1.msra.mxu0 0.0
    %366 = vmatprep.subr.mxu0 0.0
    %367 = vmatpush1.msra.mxu0 0.0
    %368 = vmatprep.subr.mxu0 0.0
    %369 = vmatpush1.msra.mxu0 0.0
    %370 = vmatprep.subr.mxu0 0.0
    %371 = vmatpush1.msra.mxu0 0.0
    %372 = vmatprep.subr.mxu0 0.0
    %373 = vmatpush1.msra.mxu0 0.0
    %374 = vmatprep.subr.mxu0 0.0
    %375 = vmatpush1.msra.mxu0 0.0
    %376 = vmatprep.mubr.f32.mxu0 0.0
    %377 = vmatmul.mubr.f32.gmra.mrb[0].mxu0 %v307
    %v378 = vpop.f32.mrb[0].mxu0
    %v379 = vadd.f32 0.0, %v378
    %v380 = vpop.f32.mrb[0].mxu0
    %381 = vmatprep.mubr.f32.mxu0 0.0
    %382 = vmatmul.mubr.f32.gmra.mrb[0].mxu0 %v310
    %v383 = vpop.f32.mrb[0].mxu0
    %v384 = vadd.f32 0.0, %v383
    %v385 = vpop.f32.mrb[0].mxu0
    %386 = vdwg.mxu0
    %v387 = vsel %vm213, %v379, 0.0
    %v388 = vsel %vm213, %v384, 0.0
    %v389 = vadd.f32 %v387, %v388
    %v390 = vrot.slane %v389, 4
    %v391 = vadd.f32 %v389, %v390
    %v392 = vrot.slane %v391, 2
    %v393 = vadd.f32 %v391, %v392
    %v394 = vrot.slane %v393, 1
    %v395 = vadd.f32 %v393, %v394
    %v396 = vmul.f32 %v303, 0.0078125
    %v397 = vmul.f32 %v395, 0.0078125
    %v398 = vmul.f32 %v396, %v396
    %v399 = vsub.f32 %v397, %v398
    %v400 = vld [vmem:[%s7] sm:$0x1]
    %v401 = vadd.f32 %v399, 1e-05
    %v402 = vrsqrt.pop %v401
    %v403 = vmul.f32 %v400, %v402
    %v404 = vld [vmem:[%s8] sm:$0x1]
    %v405 = vmul.f32 %v396, %v403
    %v406 = vsub.f32 %v404, %v405
    %v408 = vlaneseq
    %v409 = vshrl.u32 %v408, 7
    %v410 = vsub.s32 0, %v409
    %v411 = vrot.slane %v403, %v410
    %v413 = vmul.f32 %v203, %v411
    %v414 = vmul.f32 %v206, %v411
    %v416 = vlaneseq
    %v417 = vshrl.u32 %v416, 7
    %v418 = vsub.s32 0, %v417
    %v419 = vrot.slane %v406, %v418
    %v421 = vadd.f32 %v413, %v419
    %v422 = vadd.f32 %v414, %v419
    %v423 = vmax.f32 %v421, 0.0
    %v424 = vmax.f32 %v422, 0.0
    %v425 = vpack.c.bf16 %v424, %v423
    %v426 = vld [vmem:[#allocation5] sm:$0xf]
    %v427 = vld [vmem:[#allocation5 + $0x4] sm:$0xf]
    %v430 = vunpack.c.l.b16 %v426
    %v431 = vunpack.c.l.b16 %v427
    %v432 = vpack.c.b16 %v431, %v430
    %vm433 = vcmask 130048
    %v435 = vsel %vm433, %v432, 0
    %437 = vmatprep.subr.bf16.mxu0 0
    %438 = vmatpush1.bf16.msra.mxu0 %v425
    %439 = vmatprep.subr.bf16.mxu0 0
    %440 = vmatpush1.bf16.msra.mxu0 0
    %441 = vmatprep.subr.bf16.mxu0 0
    %442 = vmatpush1.bf16.msra.mxu0 0
    %443 = vmatprep.subr.bf16.mxu0 0
    %444 = vmatpush1.bf16.msra.mxu0 0
    %445 = vmatprep.subr.bf16.mxu0 0
    %446 = vmatpush1.bf16.msra.mxu0 0
    %447 = vmatprep.subr.bf16.mxu0 0
    %448 = vmatpush1.bf16.msra.mxu0 0
    %449 = vmatprep.subr.bf16.mxu0 0
    %450 = vmatpush1.bf16.msra.mxu0 0
    %451 = vmatprep.subr.bf16.mxu0 0
    %452 = vmatpush1.bf16.msra.mxu0 0
    %453 = vmatprep.subr.bf16.mxu0 0
    %454 = vmatpush1.bf16.msra.mxu0 0
    %455 = vmatprep.subr.bf16.mxu0 0
    %456 = vmatpush1.bf16.msra.mxu0 0
    %457 = vmatprep.subr.bf16.mxu0 0
    %458 = vmatpush1.bf16.msra.mxu0 0
    %459 = vmatprep.subr.bf16.mxu0 0
    %460 = vmatpush1.bf16.msra.mxu0 0
    %461 = vmatprep.subr.bf16.mxu0 0
    %462 = vmatpush1.bf16.msra.mxu0 0
    %463 = vmatprep.subr.bf16.mxu0 0
    %464 = vmatpush1.bf16.msra.mxu0 0
    %465 = vmatprep.subr.bf16.mxu0 0
    %466 = vmatpush1.bf16.msra.mxu0 0
    %467 = vmatprep.subr.bf16.mxu0 0
    %468 = vmatpush1.bf16.msra.mxu0 0
    %469 = vmatprep.mubr.bf16.mxu0 0
    %470 = vmatmul.mubr.bf16.gmra.mrb[0].mxu0 %v435
    %v471 = vpop.f32.mrb[0].mxu0
    %v472 = vadd.f32 0.0, %v471
    %v473 = vpop.f32.mrb[0].mxu0
    %v474 = vpop.f32.mrb[0].mxu0
    %v475 = vadd.f32 0.0, %v474
    %v476 = vpop.f32.mrb[0].mxu0
    %477 = vdwg.mxu0
    %v478 = vpack.c.bf16 %v475, %v472
    %v479 = vld [vmem:[%s3] sm:$0xf]
    %v480 = vld [vmem:[%s3 + $0x4] sm:$0xf]
    %v481 = vld [vmem:[%s3 + $0x8] sm:$0xf]
    %v482 = vld [vmem:[%s3 + $0xc] sm:$0xf]
    %s483 = scalar_lea.vmem [#allocation5], 8
    %v484 = vld [vmem:[%s483] sm:$0xf]
    %v485 = vld [vmem:[%s483 + $0x4] sm:$0xf]
    %v488 = vunpack.c.l.b16 %v484
    %v489 = vunpack.c.l.b16 %v485
    %v490 = vpack.c.b16 %v489, %v488
    %v492 = vsel %vm433, %v490, 0
    %494 = vmatprep.subr.bf16.mxu0 0
    %495 = vmatpush1.bf16.msra.mxu0 %v425
    %496 = vmatprep.subr.bf16.mxu0 0
    %497 = vmatpush1.bf16.msra.mxu0 0
    %498 = vmatprep.subr.bf16.mxu0 0
    %499 = vmatpush1.bf16.msra.mxu0 0
    %500 = vmatprep.subr.bf16.mxu0 0
    %501 = vmatpush1.bf16.msra.mxu0 0
    %502 = vmatprep.subr.bf16.mxu0 0
    %503 = vmatpush1.bf16.msra.mxu0 0
    %504 = vmatprep.subr.bf16.mxu0 0
    %505 = vmatpush1.bf16.msra.mxu0 0
    %506 = vmatprep.subr.bf16.mxu0 0
    %507 = vmatpush1.bf16.msra.mxu0 0
    %508 = vmatprep.subr.bf16.mxu0 0
    %509 = vmatpush1.bf16.msra.mxu0 0
    %510 = vmatprep.subr.bf16.mxu0 0
    %511 = vmatpush1.bf16.msra.mxu0 0
    %512 = vmatprep.subr.bf16.mxu0 0
    %513 = vmatpush1.bf16.msra.mxu0 0
    %514 = vmatprep.subr.bf16.mxu0 0
    %515 = vmatpush1.bf16.msra.mxu0 0
    %516 = vmatprep.subr.bf16.mxu0 0
    %517 = vmatpush1.bf16.msra.mxu0 0
    %518 = vmatprep.subr.bf16.mxu0 0
    %519 = vmatpush1.bf16.msra.mxu0 0
    %520 = vmatprep.subr.bf16.mxu0 0
    %521 = vmatpush1.bf16.msra.mxu0 0
    %522 = vmatprep.subr.bf16.mxu0 0
    %523 = vmatpush1.bf16.msra.mxu0 0
    %524 = vmatprep.subr.bf16.mxu0 0
    %525 = vmatpush1.bf16.msra.mxu0 0
    %526 = vmatprep.mubr.bf16.mxu0 0
    %527 = vmatmul.mubr.bf16.gmra.mrb[0].mxu0 %v492
    %v528 = vpop.f32.mrb[0].mxu0
    %v529 = vadd.f32 0.0, %v528
    %v530 = vpop.f32.mrb[0].mxu0
    %v531 = vpop.f32.mrb[0].mxu0
    %v532 = vadd.f32 0.0, %v531
    %v533 = vpop.f32.mrb[0].mxu0
    %534 = vdwg.mxu0
    %v535 = vpack.c.bf16 %v532, %v529
    %s536 = scalar_lea.vmem %s3, 16
    %v537 = vld [vmem:[%s536] sm:$0xf]
    %v538 = vld [vmem:[%s536 + $0x4] sm:$0xf]
    %v539 = vld [vmem:[%s536 + $0x8] sm:$0xf]
    %v540 = vld [vmem:[%s536 + $0xc] sm:$0xf]
    %v545 = vunpack.c.l.b16 %v537
    %v546 = vunpack.c.l.b16 %v538
    %v547 = vunpack.c.l.b16 %v539
    %v548 = vunpack.c.l.b16 %v540
    %v549 = vpack.c.b16 %v546, %v545
    %v550 = vpack.c.b16 %v548, %v547
    %v554 = vsel %vm213, %v535, 0
    %556 = vmatprep.subr.bf16.mxu0 0
    %557 = vmatpush1.bf16.msra.mxu0 %v549
    %558 = vmatprep.subr.bf16.mxu0 0
    %559 = vmatpush1.bf16.msra.mxu0 %v550
    %560 = vmatprep.subr.bf16.mxu0 0
    %561 = vmatpush1.bf16.msra.mxu0 0
    %562 = vmatprep.subr.bf16.mxu0 0
    %563 = vmatpush1.bf16.msra.mxu0 0
    %564 = vmatprep.subr.bf16.mxu0 0
    %565 = vmatpush1.bf16.msra.mxu0 0
    %566 = vmatprep.subr.bf16.mxu0 0
    %567 = vmatpush1.bf16.msra.mxu0 0
    %568 = vmatprep.subr.bf16.mxu0 0
    %569 = vmatpush1.bf16.msra.mxu0 0
    %570 = vmatprep.subr.bf16.mxu0 0
    %571 = vmatpush1.bf16.msra.mxu0 0
    %572 = vmatprep.subr.bf16.mxu0 0
    %573 = vmatpush1.bf16.msra.mxu0 0
    %574 = vmatprep.subr.bf16.mxu0 0
    %575 = vmatpush1.bf16.msra.mxu0 0
    %576 = vmatprep.subr.bf16.mxu0 0
    %577 = vmatpush1.bf16.msra.mxu0 0
    %578 = vmatprep.subr.bf16.mxu0 0
    %579 = vmatpush1.bf16.msra.mxu0 0
    %580 = vmatprep.subr.bf16.mxu0 0
    %581 = vmatpush1.bf16.msra.mxu0 0
    %582 = vmatprep.subr.bf16.mxu0 0
    %583 = vmatpush1.bf16.msra.mxu0 0
    %584 = vmatprep.subr.bf16.mxu0 0
    %585 = vmatpush1.bf16.msra.mxu0 0
    %586 = vmatprep.subr.bf16.mxu0 0
    %587 = vmatpush1.bf16.msra.mxu0 0
    %588 = vmatprep.mubr.bf16.mxu0 0
    %589 = vmatmul.mubr.bf16.gmra.mrb[0].mxu0 %v554
    %v590 = vpop.f32.mrb[0].mxu0
    %v591 = vadd.f32 0.0, %v590
    %v592 = vpop.f32.mrb[0].mxu0
    %v593 = vpop.f32.mrb[0].mxu0
    %v594 = vadd.f32 0.0, %v593
    %v595 = vpop.f32.mrb[0].mxu0
    %596 = vdwg.mxu0
    %v601 = vunpack.c.l.b16 %v479
    %v602 = vunpack.c.l.b16 %v480
    %v603 = vunpack.c.l.b16 %v481
    %v604 = vunpack.c.l.b16 %v482
    %v605 = vpack.c.b16 %v602, %v601
    %v606 = vpack.c.b16 %v604, %v603
    %v610 = vsel %vm213, %v478, 0
    %612 = vmatprep.subr.bf16.mxu0 0
    %613 = vmatpush1.bf16.msra.mxu0 %v605
    %614 = vmatprep.subr.bf16.mxu0 0
    %615 = vmatpush1.bf16.msra.mxu0 %v606
    %616 = vmatprep.subr.bf16.mxu0 0
    %617 = vmatpush1.bf16.msra.mxu0 0
    %618 = vmatprep.subr.bf16.mxu0 0
    %619 = vmatpush1.bf16.msra.mxu0 0
    %620 = vmatprep.subr.bf16.mxu0 0
    %621 = vmatpush1.bf16.msra.mxu0 0
    %622 = vmatprep.subr.bf16.mxu0 0
    %623 = vmatpush1.bf16.msra.mxu0 0
    %624 = vmatprep.subr.bf16.mxu0 0
    %625 = vmatpush1.bf16.msra.mxu0 0
    %626 = vmatprep.subr.bf16.mxu0 0
    %627 = vmatpush1.bf16.msra.mxu0 0
    %628 = vmatprep.subr.bf16.mxu0 0
    %629 = vmatpush1.bf16.msra.mxu0 0
    %630 = vmatprep.subr.bf16.mxu0 0
    %631 = vmatpush1.bf16.msra.mxu0 0
    %632 = vmatprep.subr.bf16.mxu0 0
    %633 = vmatpush1.bf16.msra.mxu0 0
    %634 = vmatprep.subr.bf16.mxu0 0
    %635 = vmatpush1.bf16.msra.mxu0 0
    %636 = vmatprep.subr.bf16.mxu0 0
    %637 = vmatpush1.bf16.msra.mxu0 0
    %638 = vmatprep.subr.bf16.mxu0 0
    %639 = vmatpush1.bf16.msra.mxu0 0
    %640 = vmatprep.subr.bf16.mxu0 0
    %641 = vmatpush1.bf16.msra.mxu0 0
    %642 = vmatprep.subr.bf16.mxu0 0
    %643 = vmatpush1.bf16.msra.mxu0 0
    %644 = vmatprep.mubr.bf16.mxu0 0
    %645 = vmatmul.mubr.bf16.gmra.mrb[0].mxu0 %v610
    %v646 = vpop.f32.mrb[0].mxu0
    %v647 = vadd.f32 %v591, %v646
    %v648 = vpop.f32.mrb[0].mxu0
    %v649 = vpop.f32.mrb[0].mxu0
    %v650 = vadd.f32 %v594, %v649
    %v651 = vpop.f32.mrb[0].mxu0
    %652 = vdwg.mxu0
    %s653 = scalar_lea.vmem [#allocation5], 16
    %v654 = vld [vmem:[%s653] sm:$0xf]
    %v655 = vld [vmem:[%s653 + $0x4] sm:$0xf]
    %v658 = vunpack.c.l.b16 %v654
    %v659 = vunpack.c.l.b16 %v655
    %v660 = vpack.c.b16 %v659, %v658
    %v662 = vsel %vm433, %v660, 0
    %664 = vmatprep.subr.bf16.mxu0 0
    %665 = vmatpush1.bf16.msra.mxu0 %v425
    %666 = vmatprep.subr.bf16.mxu0 0
    %667 = vmatpush1.bf16.msra.mxu0 0
    %668 = vmatprep.subr.bf16.mxu0 0
    %669 = vmatpush1.bf16.msra.mxu0 0
    %670 = vmatprep.subr.bf16.mxu0 0
    %671 = vmatpush1.bf16.msra.mxu0 0
    %672 = vmatprep.subr.bf16.mxu0 0
    %673 = vmatpush1.bf16.msra.mxu0 0
    %674 = vmatprep.subr.bf16.mxu0 0
    %675 = vmatpush1.bf16.msra.mxu0 0
    %676 = vmatprep.subr.bf16.mxu0 0
    %677 = vmatpush1.bf16.msra.mxu0 0
    %678 = vmatprep.subr.bf16.mxu0 0
    %679 = vmatpush1.bf16.msra.mxu0 0
    %680 = vmatprep.subr.bf16.mxu0 0
    %681 = vmatpush1.bf16.msra.mxu0 0
    %682 = vmatprep.subr.bf16.mxu0 0
    %683 = vmatpush1.bf16.msra.mxu0 0
    %684 = vmatprep.subr.bf16.mxu0 0
    %685 = vmatpush1.bf16.msra.mxu0 0
    %686 = vmatprep.subr.bf16.mxu0 0
    %687 = vmatpush1.bf16.msra.mxu0 0
    %688 = vmatprep.subr.bf16.mxu0 0
    %689 = vmatpush1.bf16.msra.mxu0 0
    %690 = vmatprep.subr.bf16.mxu0 0
    %691 = vmatpush1.bf16.msra.mxu0 0
    %692 = vmatprep.subr.bf16.mxu0 0
    %693 = vmatpush1.bf16.msra.mxu0 0
    %694 = vmatprep.subr.bf16.mxu0 0
    %695 = vmatpush1.bf16.msra.mxu0 0
    %696 = vmatprep.mubr.bf16.mxu0 0
    %697 = vmatmul.mubr.bf16.gmra.mrb[0].mxu0 %v662
    %v698 = vpop.f32.mrb[0].mxu0
    %v699 = vadd.f32 0.0, %v698
    %v700 = vpop.f32.mrb[0].mxu0
    %v701 = vpop.f32.mrb[0].mxu0
    %v702 = vadd.f32 0.0, %v701
    %v703 = vpop.f32.mrb[0].mxu0
    %704 = vdwg.mxu0
    %v705 = vpack.c.bf16 %v702, %v699
    %s706 = scalar_lea.vmem %s3, 32
    %v707 = vld [vmem:[%s706] sm:$0xf]
    %v708 = vld [vmem:[%s706 + $0x4] sm:$0xf]
    %v709 = vld [vmem:[%s706 + $0x8] sm:$0xf]
    %v710 = vld [vmem:[%s706 + $0xc] sm:$0xf]
    %v715 = vunpack.c.l.b16 %v707
    %v716 = vunpack.c.l.b16 %v708
    %v717 = vunpack.c.l.b16 %v709
    %v718 = vunpack.c.l.b16 %v710
    %v719 = vpack.c.b16 %v716, %v715
    %v720 = vpack.c.b16 %v718, %v717
    %v724 = vsel %vm213, %v705, 0
    %726 = vmatprep.subr.bf16.mxu0 0
    %727 = vmatpush1.bf16.msra.mxu0 %v719
    %728 = vmatprep.subr.bf16.mxu0 0
    %729 = vmatpush1.bf16.msra.mxu0 %v720
    %730 = vmatprep.subr.bf16.mxu0 0
    %731 = vmatpush1.bf16.msra.mxu0 0
    %732 = vmatprep.subr.bf16.mxu0 0
    %733 = vmatpush1.bf16.msra.mxu0 0
    %734 = vmatprep.subr.bf16.mxu0 0
    %735 = vmatpush1.bf16.msra.mxu0 0
    %736 = vmatprep.subr.bf16.mxu0 0
    %737 = vmatpush1.bf16.msra.mxu0 0
    %738 = vmatprep.subr.bf16.mxu0 0
    %739 = vmatpush1.bf16.msra.mxu0 0
    %740 = vmatprep.subr.bf16.mxu0 0
    %741 = vmatpush1.bf16.msra.mxu0 0
    %742 = vmatprep.subr.bf16.mxu0 0
    %743 = vmatpush1.bf16.msra.mxu0 0
    %744 = vmatprep.subr.bf16.mxu0 0
    %745 = vmatpush1.bf16.msra.mxu0 0
    %746 = vmatprep.subr.bf16.mxu0 0
    %747 = vmatpush1.bf16.msra.mxu0 0
    %748 = vmatprep.subr.bf16.mxu0 0
    %749 = vmatpush1.bf16.msra.mxu0 0
    %750 = vmatprep.subr.bf16.mxu0 0
    %751 = vmatpush1.bf16.msra.mxu0 0
    %752 = vmatprep.subr.bf16.mxu0 0
    %753 = vmatpush1.bf16.msra.mxu0 0
    %754 = vmatprep.subr.bf16.mxu0 0
    %755 = vmatpush1.bf16.msra.mxu0 0
    %756 = vmatprep.subr.bf16.mxu0 0
    %757 = vmatpush1.bf16.msra.mxu0 0
    %758 = vmatprep.mubr.bf16.mxu0 0
    %759 = vmatmul.mubr.bf16.gmra.mrb[0].mxu0 %v724
    %v760 = vpop.f32.mrb[0].mxu0
    %v761 = vadd.f32 0.0, %v760
    %v762 = vpop.f32.mrb[0].mxu0
    %v763 = vpop.f32.mrb[0].mxu0
    %v764 = vadd.f32 0.0, %v763
    %v765 = vpop.f32.mrb[0].mxu0
    %766 = vdwg.mxu0
    %v767 = vadd.f32 %v647, %v761
    %v768 = vadd.f32 %v650, %v764
    %v770 = vsel %vm213, %v767, 0
    %v773 = vsel %vm213, %v768, 0
    %775 = vmatprep.subr.mxu0 0.0
    %776 = vmatpush1.msra.mxu0 %v209
    %777 = vmatprep.subr.mxu0 0.0
    %778 = vmatpush1.msra.mxu0 %v210
    %779 = vmatprep.subr.mxu0 0.0
    %780 = vmatpush1.msra.mxu0 %v211
    %781 = vmatprep.subr.mxu0 0.0
    %782 = vmatpush1.msra.mxu0 %v212
    %783 = vmatprep.subr.mxu0 0.0
    %784 = vmatpush1.msra.mxu0 0.0
    %785 = vmatprep.subr.mxu0 0.0
    %786 = vmatpush1.msra.mxu0 0.0
    %787 = vmatprep.subr.mxu0 0.0
    %788 = vmatpush1.msra.mxu0 0.0
    %789 = vmatprep.subr.mxu0 0.0
    %790 = vmatpush1.msra.mxu0 0.0
    %791 = vmatprep.subr.mxu0 0.0
    %792 = vmatpush1.msra.mxu0 0.0
    %793 = vmatprep.subr.mxu0 0.0
    %794 = vmatpush1.msra.mxu0 0.0
    %795 = vmatprep.subr.mxu0 0.0
    %796 = vmatpush1.msra.mxu0 0.0
    %797 = vmatprep.subr.mxu0 0.0
    %798 = vmatpush1.msra.mxu0 0.0
    %799 = vmatprep.subr.mxu0 0.0
    %800 = vmatpush1.msra.mxu0 0.0
    %801 = vmatprep.subr.mxu0 0.0
    %802 = vmatpush1.msra.mxu0 0.0
    %803 = vmatprep.subr.mxu0 0.0
    %804 = vmatpush1.msra.mxu0 0.0
    %805 = vmatprep.subr.mxu0 0.0
    %806 = vmatpush1.msra.mxu0 0.0
    %807 = vmatprep.subr.mxu0 0.0
    %808 = vmatpush1.msra.mxu0 0.0
    %809 = vmatprep.subr.mxu0 0.0
    %810 = vmatpush1.msra.mxu0 0.0
    %811 = vmatprep.subr.mxu0 0.0
    %812 = vmatpush1.msra.mxu0 0.0
    %813 = vmatprep.subr.mxu0 0.0
    %814 = vmatpush1.msra.mxu0 0.0
    %815 = vmatprep.subr.mxu0 0.0
    %816 = vmatpush1.msra.mxu0 0.0
    %817 = vmatprep.subr.mxu0 0.0
    %818 = vmatpush1.msra.mxu0 0.0
    %819 = vmatprep.subr.mxu0 0.0
    %820 = vmatpush1.msra.mxu0 0.0
    %821 = vmatprep.subr.mxu0 0.0
    %822 = vmatpush1.msra.mxu0 0.0
    %823 = vmatprep.subr.mxu0 0.0
    %824 = vmatpush1.msra.mxu0 0.0
    %825 = vmatprep.subr.mxu0 0.0
    %826 = vmatpush1.msra.mxu0 0.0
    %827 = vmatprep.subr.mxu0 0.0
    %828 = vmatpush1.msra.mxu0 0.0
    %829 = vmatprep.subr.mxu0 0.0
    %830 = vmatpush1.msra.mxu0 0.0
    %831 = vmatprep.subr.mxu0 0.0
    %832 = vmatpush1.msra.mxu0 0.0
    %833 = vmatprep.subr.mxu0 0.0
    %834 = vmatpush1.msra.mxu0 0.0
    %835 = vmatprep.subr.mxu0 0.0
    %836 = vmatpush1.msra.mxu0 0.0
    %837 = vmatprep.subr.mxu0 0.0
    %838 = vmatpush1.msra.mxu0 0.0
    %839 = vmatprep.mubr.f32.mxu0 0.0
    %840 = vmatmul.mubr.f32.gmra.mrb[0].mxu0 %v770
    %v841 = vpop.f32.mrb[0].mxu0
    %v842 = vadd.f32 0.0, %v841
    %v843 = vpop.f32.mrb[0].mxu0
    %844 = vmatprep.mubr.f32.mxu0 0.0
    %845 = vmatmul.mubr.f32.gmra.mrb[0].mxu0 %v773
    %v846 = vpop.f32.mrb[0].mxu0
    %v847 = vadd.f32 0.0, %v846
    %v848 = vpop.f32.mrb[0].mxu0
    %849 = vdwg.mxu0
    %v850 = vsel %vm213, %v842, 0.0
    %v851 = vsel %vm213, %v847, 0.0
    %v852 = vadd.f32 %v850, %v851
    %v853 = vrot.slane %v852, 4
    %v854 = vadd.f32 %v852, %v853
    %v855 = vrot.slane %v854, 2
    %v856 = vadd.f32 %v854, %v855
    %v857 = vrot.slane %v856, 1
    %v858 = vadd.f32 %v856, %v857
    %v859 = vmul.f32 %v767, %v767
    %v860 = vmul.f32 %v768, %v768
    %v862 = vsel %vm213, %v859, 0
    %v865 = vsel %vm213, %v860, 0
    %867 = vmatprep.subr.mxu0 0.0
    %868 = vmatpush1.msra.mxu0 %v209
    %869 = vmatprep.subr.mxu0 0.0
    %870 = vmatpush1.msra.mxu0 %v210
    %871 = vmatprep.subr.mxu0 0.0
    %872 = vmatpush1.msra.mxu0 %v211
    %873 = vmatprep.subr.mxu0 0.0
    %874 = vmatpush1.msra.mxu0 %v212
    %875 = vmatprep.subr.mxu0 0.0
    %876 = vmatpush1.msra.mxu0 0.0
    %877 = vmatprep.subr.mxu0 0.0
    %878 = vmatpush1.msra.mxu0 0.0
    %879 = vmatprep.subr.mxu0 0.0
    %880 = vmatpush1.msra.mxu0 0.0
    %881 = vmatprep.subr.mxu0 0.0
    %882 = vmatpush1.msra.mxu0 0.0
    %883 = vmatprep.subr.mxu0 0.0
    %884 = vmatpush1.msra.mxu0 0.0
    %885 = vmatprep.subr.mxu0 0.0
    %886 = vmatpush1.msra.mxu0 0.0
    %887 = vmatprep.subr.mxu0 0.0
    %888 = vmatpush1.msra.mxu0 0.0
    %889 = vmatprep.subr.mxu0 0.0
    %890 = vmatpush1.msra.mxu0 0.0
    %891 = vmatprep.subr.mxu0 0.0
    %892 = vmatpush1.msra.mxu0 0.0
    %893 = vmatprep.subr.mxu0 0.0
    %894 = vmatpush1.msra.mxu0 0.0
    %895 = vmatprep.subr.mxu0 0.0
    %896 = vmatpush1.msra.mxu0 0.0
    %897 = vmatprep.subr.mxu0 0.0
    %898 = vmatpush1.msra.mxu0 0.0
    %899 = vmatprep.subr.mxu0 0.0
    %900 = vmatpush1.msra.mxu0 0.0
    %901 = vmatprep.subr.mxu0 0.0
    %902 = vmatpush1.msra.mxu0 0.0
    %903 = vmatprep.subr.mxu0 0.0
    %904 = vmatpush1.msra.mxu0 0.0
    %905 = vmatprep.subr.mxu0 0.0
    %906 = vmatpush1.msra.mxu0 0.0
    %907 = vmatprep.subr.mxu0 0.0
    %908 = vmatpush1.msra.mxu0 0.0
    %909 = vmatprep.subr.mxu0 0.0
    %910 = vmatpush1.msra.mxu0 0.0
    %911 = vmatprep.subr.mxu0 0.0
    %912 = vmatpush1.msra.mxu0 0.0
    %913 = vmatprep.subr.mxu0 0.0
    %914 = vmatpush1.msra.mxu0 0.0
    %915 = vmatprep.subr.mxu0 0.0
    %916 = vmatpush1.msra.mxu0 0.0
    %917 = vmatprep.subr.mxu0 0.0
    %918 = vmatpush1.msra.mxu0 0.0
    %919 = vmatprep.subr.mxu0 0.0
    %920 = vmatpush1.msra.mxu0 0.0
    %921 = vmatprep.subr.mxu0 0.0
    %922 = vmatpush1.msra.mxu0 0.0
    %923 = vmatprep.subr.mxu0 0.0
    %924 = vmatpush1.msra.mxu0 0.0
    %925 = vmatprep.subr.mxu0 0.0
    %926 = vmatpush1.msra.mxu0 0.0
    %927 = vmatprep.subr.mxu0 0.0
    %928 = vmatpush1.msra.mxu0 0.0
    %929 = vmatprep.subr.mxu0 0.0
    %930 = vmatpush1.msra.mxu0 0.0
    %931 = vmatprep.mubr.f32.mxu0 0.0
    %932 = vmatmul.mubr.f32.gmra.mrb[0].mxu0 %v862
    %v933 = vpop.f32.mrb[0].mxu0
    %v934 = vadd.f32 0.0, %v933
    %v935 = vpop.f32.mrb[0].mxu0
    %936 = vmatprep.mubr.f32.mxu0 0.0
    %937 = vmatmul.mubr.f32.gmra.mrb[0].mxu0 %v865
    %v938 = vpop.f32.mrb[0].mxu0
    %v939 = vadd.f32 0.0, %v938
    %v940 = vpop.f32.mrb[0].mxu0
    %941 = vdwg.mxu0
    %v942 = vsel %vm213, %v934, 0.0
    %v943 = vsel %vm213, %v939, 0.0
    %v944 = vadd.f32 %v942, %v943
    %v945 = vrot.slane %v944, 4
    %v946 = vadd.f32 %v944, %v945
    %v947 = vrot.slane %v946, 2
    %v948 = vadd.f32 %v946, %v947
    %v949 = vrot.slane %v948, 1
    %v950 = vadd.f32 %v948, %v949
    %v951 = vmul.f32 %v858, 0.0078125
    %v952 = vmul.f32 %v950, 0.0078125
    %v953 = vmul.f32 %v951, %v951
    %v954 = vsub.f32 %v952, %v953
    %v955 = vld [vmem:[%s9] sm:$0x1]
    %v956 = vadd.f32 %v954, 1e-05
    %v957 = vrsqrt.pop %v956
    %v958 = vmul.f32 %v955, %v957
    %v959 = vld [vmem:[%s10] sm:$0x1]
    %v960 = vmul.f32 %v951, %v958
    %v961 = vsub.f32 %v959, %v960
    %v963 = vlaneseq
    %v964 = vshrl.u32 %v963, 7
    %v965 = vsub.s32 0, %v964
    %v966 = vrot.slane %v958, %v965
    %v968 = vmul.f32 %v767, %v966
    %v969 = vmul.f32 %v768, %v966
    %v971 = vlaneseq
    %v972 = vshrl.u32 %v971, 7
    %v973 = vsub.s32 0, %v972
    %v974 = vrot.slane %v961, %v973
    %v976 = vadd.f32 %v968, %v974
    %v977 = vadd.f32 %v969, %v974
    %v978 = vmax.f32 %v976, 0.0
    %v979 = vmax.f32 %v977, 0.0
    %v980 = vpack.c.bf16 %v979, %v978
    %v981 = vld [vmem:[#allocation7] sm:$0xf]
    %v982 = vld [vmem:[#allocation7 + $0x4] sm:$0xf]
    %v983 = vld [vmem:[#allocation7 + $0x8] sm:$0xf]
    %v984 = vld [vmem:[#allocation7 + $0xc] sm:$0xf]
    %v989 = vunpack.c.l.b16 %v981
    %v990 = vunpack.c.l.b16 %v982
    %v991 = vunpack.c.l.b16 %v983
    %v992 = vunpack.c.l.b16 %v984
    %v993 = vpack.c.b16 %v990, %v989
    %v994 = vpack.c.b16 %v992, %v991
    %v998 = vsel %vm213, %v980, 0
    %1000 = vmatprep.subr.bf16.mxu0 0
    %1001 = vmatpush1.bf16.msra.mxu0 %v993
    %1002 = vmatprep.subr.bf16.mxu0 0
    %1003 = vmatpush1.bf16.msra.mxu0 %v994
    %1004 = vmatprep.subr.bf16.mxu0 0
    %1005 = vmatpush1.bf16.msra.mxu0 0
    %1006 = vmatprep.subr.bf16.mxu0 0
    %1007 = vmatpush1.bf16.msra.mxu0 0
    %1008 = vmatprep.subr.bf16.mxu0 0
    %1009 = vmatpush1.bf16.msra.mxu0 0
    %1010 = vmatprep.subr.bf16.mxu0 0
    %1011 = vmatpush1.bf16.msra.mxu0 0
    %1012 = vmatprep.subr.bf16.mxu0 0
    %1013 = vmatpush1.bf16.msra.mxu0 0
    %1014 = vmatprep.subr.bf16.mxu0 0
    %1015 = vmatpush1.bf16.msra.mxu0 0
    %1016 = vmatprep.subr.bf16.mxu0 0
    %1017 = vmatpush1.bf16.msra.mxu0 0
    %1018 = vmatprep.subr.bf16.mxu0 0
    %1019 = vmatpush1.bf16.msra.mxu0 0
    %1020 = vmatprep.subr.bf16.mxu0 0
    %1021 = vmatpush1.bf16.msra.mxu0 0
    %1022 = vmatprep.subr.bf16.mxu0 0
    %1023 = vmatpush1.bf16.msra.mxu0 0
    %1024 = vmatprep.subr.bf16.mxu0 0
    %1025 = vmatpush1.bf16.msra.mxu0 0
    %1026 = vmatprep.subr.bf16.mxu0 0
    %1027 = vmatpush1.bf16.msra.mxu0 0
    %1028 = vmatprep.subr.bf16.mxu0 0
    %1029 = vmatpush1.bf16.msra.mxu0 0
    %1030 = vmatprep.subr.bf16.mxu0 0
    %1031 = vmatpush1.bf16.msra.mxu0 0
    %1032 = vmatprep.mubr.bf16.mxu0 0
    %1033 = vmatmul.mubr.bf16.gmra.mrb[0].mxu0 %v998
    %v1034 = vpop.f32.mrb[0].mxu0
    %v1035 = vadd.f32 0.0, %v1034
    %v1036 = vpop.f32.mrb[0].mxu0
    %v1037 = vpop.f32.mrb[0].mxu0
    %v1038 = vadd.f32 0.0, %v1037
    %v1039 = vpop.f32.mrb[0].mxu0
    %1040 = vdwg.mxu0
    %v1041 = vld [vmem:[#allocation8] sm:$0xff]
    %v1042 = vld [vmem:[#allocation8 + $0x8] sm:$0xff]
    %v1043 = vld [vmem:[#allocation8 + $0x10] sm:$0xff]
    %v1044 = vld [vmem:[#allocation8 + $0x18] sm:$0xff]
    %v1045 = vld [vmem:[#allocation8 + $0x20] sm:$0xff]
    %v1046 = vld [vmem:[#allocation8 + $0x28] sm:$0xff]
    %v1047 = vld [vmem:[#allocation8 + $0x30] sm:$0xff]
    %v1048 = vld [vmem:[#allocation8 + $0x38] sm:$0xff]
    %v1049 = vld [vmem:[#allocation8 + $0x40] sm:$0xff]
    %v1050 = vld [vmem:[#allocation8 + $0x48] sm:$0xff]
    %v1051 = vld [vmem:[#allocation8 + $0x50] sm:$0xff]
    %v1052 = vld [vmem:[#allocation8 + $0x58] sm:$0xff]
    %v1053 = vld [vmem:[#allocation8 + $0x60] sm:$0xff]
    %v1054 = vld [vmem:[#allocation8 + $0x68] sm:$0xff]
    %v1055 = vld [vmem:[#allocation8 + $0x70] sm:$0xff]
    %v1056 = vld [vmem:[#allocation8 + $0x78] sm:$0xff]
    %1057 = vmatprep.subr.mxu0 0.0
    %1058 = vmatpush1.msra.mxu0 %v1041
    %1059 = vmatprep.subr.mxu0 0.0
    %1060 = vmatpush1.msra.mxu0 %v1042
    %1061 = vmatprep.subr.mxu0 0.0
    %1062 = vmatpush1.msra.mxu0 %v1043
    %1063 = vmatprep.subr.mxu0 0.0
    %1064 = vmatpush1.msra.mxu0 %v1044
    %1065 = vmatprep.subr.mxu0 0.0
    %1066 = vmatpush1.msra.mxu0 %v1045
    %1067 = vmatprep.subr.mxu0 0.0
    %1068 = vmatpush1.msra.mxu0 %v1046
    %1069 = vmatprep.subr.mxu0 0.0
    %1070 = vmatpush1.msra.mxu0 %v1047
    %1071 = vmatprep.subr.mxu0 0.0
    %1072 = vmatpush1.msra.mxu0 %v1048
    %1073 = vmatprep.subr.mxu0 0.0
    %1074 = vmatpush1.msra.mxu0 %v1049
    %1075 = vmatprep.subr.mxu0 0.0
    %1076 = vmatpush1.msra.mxu0 %v1050
    %1077 = vmatprep.subr.mxu0 0.0
    %1078 = vmatpush1.msra.mxu0 %v1051
    %1079 = vmatprep.subr.mxu0 0.0
    %1080 = vmatpush1.msra.mxu0 %v1052
    %1081 = vmatprep.subr.mxu0 0.0
    %1082 = vmatpush1.msra.mxu0 %v1053
    %1083 = vmatprep.subr.mxu0 0.0
    %1084 = vmatpush1.msra.mxu0 %v1054
    %1085 = vmatprep.subr.mxu0 0.0
    %1086 = vmatpush1.msra.mxu0 %v1055
    %1087 = vmatprep.subr.mxu0 0.0
    %1088 = vmatpush1.msra.mxu0 %v1056
    %1089 = vmatprep.subr.mxu0 0.0
    %1090 = vmatpush1.msra.mxu0 0.0
    %1091 = vmatprep.subr.mxu0 0.0
    %1092 = vmatpush1.msra.mxu0 0.0
    %1093 = vmatprep.subr.mxu0 0.0
    %1094 = vmatpush1.msra.mxu0 0.0
    %1095 = vmatprep.subr.mxu0 0.0
    %1096 = vmatpush1.msra.mxu0 0.0
    %1097 = vmatprep.subr.mxu0 0.0
    %1098 = vmatpush1.msra.mxu0 0.0
    %1099 = vmatprep.subr.mxu0 0.0
    %1100 = vmatpush1.msra.mxu0 0.0
    %1101 = vmatprep.subr.mxu0 0.0
    %1102 = vmatpush1.msra.mxu0 0.0
    %1103 = vmatprep.subr.mxu0 0.0
    %1104 = vmatpush1.msra.mxu0 0.0
    %1105 = vmatprep.subr.mxu0 0.0
    %1106 = vmatpush1.msra.mxu0 0.0
    %1107 = vmatprep.subr.mxu0 0.0
    %1108 = vmatpush1.msra.mxu0 0.0
    %1109 = vmatprep.subr.mxu0 0.0
    %1110 = vmatpush1.msra.mxu0 0.0
    %1111 = vmatprep.subr.mxu0 0.0
    %1112 = vmatpush1.msra.mxu0 0.0
    %1113 = vmatprep.subr.mxu0 0.0
    %1114 = vmatpush1.msra.mxu0 0.0
    %1115 = vmatprep.subr.mxu0 0.0
    %1116 = vmatpush1.msra.mxu0 0.0
    %1117 = vmatprep.subr.mxu0 0.0
    %1118 = vmatpush1.msra.mxu0 0.0
    %1119 = vmatprep.subr.mxu0 0.0
    %1120 = vmatpush1.msra.mxu0 0.0
    %1121 = vmatprep.mubr.f32.mxu0 0.0
    %1122 = vmatmul.mubr.f32.gmra.mrb[0].mxu0 %v1035
    %v1123 = vpop.f32.mrb[0].mxu0
    %v1124 = vadd.f32 0.0, %v1123
    %v1125 = vpop.f32.mrb[0].mxu0
    %1126 = vmatprep.mubr.f32.mxu0 0.0
    %1127 = vmatmul.mubr.f32.gmra.mrb[0].mxu0 %v1038
    %v1128 = vpop.f32.mrb[0].mxu0
    %v1129 = vadd.f32 0.0, %v1128
    %v1130 = vpop.f32.mrb[0].mxu0
    %1131 = vdwg.mxu0
    %v1132 = vadd.f32 %v1124, %v1129
    %v1133 = vrot.slane %v1132, 4
    %v1134 = vadd.f32 %v1132, %v1133
    %v1135 = vrot.slane %v1134, 2
    %v1136 = vadd.f32 %v1134, %v1135
    %v1137 = vrot.slane %v1136, 1
    %v1138 = vadd.f32 %v1136, %v1137
    %v1139 = vmul.f32 %v1035, %v1035
    %v1140 = vmul.f32 %v1038, %v1038
    %1141 = vmatprep.subr.mxu0 0.0
    %1142 = vmatpush1.msra.mxu0 %v1041
    %1143 = vmatprep.subr.mxu0 0.0
    %1144 = vmatpush1.msra.mxu0 %v1042
    %1145 = vmatprep.subr.mxu0 0.0
    %1146 = vmatpush1.msra.mxu0 %v1043
    %1147 = vmatprep.subr.mxu0 0.0
    %1148 = vmatpush1.msra.mxu0 %v1044
    %1149 = vmatprep.subr.mxu0 0.0
    %1150 = vmatpush1.msra.mxu0 %v1045
    %1151 = vmatprep.subr.mxu0 0.0
    %1152 = vmatpush1.msra.mxu0 %v1046
    %1153 = vmatprep.subr.mxu0 0.0
    %1154 = vmatpush1.msra.mxu0 %v1047
    %1155 = vmatprep.subr.mxu0 0.0
    %1156 = vmatpush1.msra.mxu0 %v1048
    %1157 = vmatprep.subr.mxu0 0.0
    %1158 = vmatpush1.msra.mxu0 %v1049
    %1159 = vmatprep.subr.mxu0 0.0
    %1160 = vmatpush1.msra.mxu0 %v1050
    %1161 = vmatprep.subr.mxu0 0.0
    %1162 = vmatpush1.msra.mxu0 %v1051
    %1163 = vmatprep.subr.mxu0 0.0
    %1164 = vmatpush1.msra.mxu0 %v1052
    %1165 = vmatprep.subr.mxu0 0.0
    %1166 = vmatpush1.msra.mxu0 %v1053
    %1167 = vmatprep.subr.mxu0 0.0
    %1168 = vmatpush1.msra.mxu0 %v1054
    %1169 = vmatprep.subr.mxu0 0.0
    %1170 = vmatpush1.msra.mxu0 %v1055
    %1171 = vmatprep.subr.mxu0 0.0
    %1172 = vmatpush1.msra.mxu0 %v1056
    %1173 = vmatprep.subr.mxu0 0.0
    %1174 = vmatpush1.msra.mxu0 0.0
    %1175 = vmatprep.subr.mxu0 0.0
    %1176 = vmatpush1.msra.mxu0 0.0
    %1177 = vmatprep.subr.mxu0 0.0
    %1178 = vmatpush1.msra.mxu0 0.0
    %1179 = vmatprep.subr.mxu0 0.0
    %1180 = vmatpush1.msra.mxu0 0.0
    %1181 = vmatprep.subr.mxu0 0.0
    %1182 = vmatpush1.msra.mxu0 0.0
    %1183 = vmatprep.subr.mxu0 0.0
    %1184 = vmatpush1.msra.mxu0 0.0
    %1185 = vmatprep.subr.mxu0 0.0
    %1186 = vmatpush1.msra.mxu0 0.0
    %1187 = vmatprep.subr.mxu0 0.0
    %1188 = vmatpush1.msra.mxu0 0.0
    %1189 = vmatprep.subr.mxu0 0.0
    %1190 = vmatpush1.msra.mxu0 0.0
    %1191 = vmatprep.subr.mxu0 0.0
    %1192 = vmatpush1.msra.mxu0 0.0
    %1193 = vmatprep.subr.mxu0 0.0
    %1194 = vmatpush1.msra.mxu0 0.0
    %1195 = vmatprep.subr.mxu0 0.0
    %1196 = vmatpush1.msra.mxu0 0.0
    %1197 = vmatprep.subr.mxu0 0.0
    %1198 = vmatpush1.msra.mxu0 0.0
    %1199 = vmatprep.subr.mxu0 0.0
    %1200 = vmatpush1.msra.mxu0 0.0
    %1201 = vmatprep.subr.mxu0 0.0
    %1202 = vmatpush1.msra.mxu0 0.0
    %1203 = vmatprep.subr.mxu0 0.0
    %1204 = vmatpush1.msra.mxu0 0.0
    %1205 = vmatprep.mubr.f32.mxu0 0.0
    %1206 = vmatmul.mubr.f32.gmra.mrb[0].mxu0 %v1139
    %v1207 = vpop.f32.mrb[0].mxu0
    %v1208 = vadd.f32 0.0, %v1207
    %v1209 = vpop.f32.mrb[0].mxu0
    %1210 = vmatprep.mubr.f32.mxu0 0.0
    %1211 = vmatmul.mubr.f32.gmra.mrb[0].mxu0 %v1140
    %v1212 = vpop.f32.mrb[0].mxu0
    %v1213 = vadd.f32 0.0, %v1212
    %v1214 = vpop.f32.mrb[0].mxu0
    %1215 = vdwg.mxu0
    %v1216 = vadd.f32 %v1208, %v1213
    %v1217 = vrot.slane %v1216, 4
    %v1218 = vadd.f32 %v1216, %v1217
    %v1219 = vrot.slane %v1218, 2
    %v1220 = vadd.f32 %v1218, %v1219
    %v1221 = vrot.slane %v1220, 1
    %v1222 = vadd.f32 %v1220, %v1221
    %v1223 = vmul.f32 %v1138, 0.0078125
    %v1224 = vmul.f32 %v1222, 0.0078125
    %v1225 = vmul.f32 %v1223, %v1223
    %v1226 = vsub.f32 %v1224, %v1225
    %v1227 = vld [vmem:[%s11] sm:$0x1]
    %v1228 = vadd.f32 %v1226, 1e-05
    %v1229 = vrsqrt.pop %v1228
    %v1230 = vmul.f32 %v1227, %v1229
    %v1231 = vld [vmem:[%s12] sm:$0x1]
    %v1232 = vmul.f32 %v1223, %v1230
    %v1233 = vsub.f32 %v1231, %v1232
    %v1235 = vlaneseq
    %v1236 = vshrl.u32 %v1235, 7
    %v1237 = vsub.s32 0, %v1236
    %v1238 = vrot.slane %v1230, %v1237
    %v1240 = vmul.f32 %v1035, %v1238
    %v1241 = vmul.f32 %v1038, %v1238
    %v1243 = vlaneseq
    %v1244 = vshrl.u32 %v1243, 7
    %v1245 = vsub.s32 0, %v1244
    %v1246 = vrot.slane %v1233, %v1245
    %v1248 = vadd.f32 %v1240, %v1246
    %v1249 = vadd.f32 %v1241, %v1246
    %v1250 = vadd.f32 %v1248, %v101
    %v1251 = vadd.f32 %v1249, %v102
    %v1252 = vmax.f32 %v1250, 0.0
    %v1253 = vmax.f32 %v1251, 0.0
    %1254 = vst [vmem:[#allocation10] sm:$0xff] %v1252
    %1255 = vst [vmem:[#allocation10 + $0x8] sm:$0xff] %v1253
    // Predicated region
    $region70: #{tpu_custom_call.1} parent=1 // pred_check
      _
    $region71: #{tpu_custom_call.1} parent=1 // pred_check_branch
      %1257 = sbr.rel (0) target = $region73
    $region72: #{tpu_custom_call.1} parent=1 // pred_region
      %s1259 = ssub.s32 256, 256
      %1260 = vsyncadd [#allocation4], %s1259
      %s1261 = sshll.u32 [#allocation10], 4
      %s1262 = int_to_ptr.vmem [resolvable:$true] %s1261
      %1267 = dma.vmem_to_hbm [thread:$0]  %s1262, 256, %s13, [#allocation4], 128, 128, 8
    $region73: #{tpu_custom_call.1} parent=1 // pred_fallthru
      _
    // Predicated region
    $region74: #{tpu_custom_call.1} parent=1 // pred_check
      _
    $region75: #{tpu_custom_call.1} parent=1 // pred_check_branch
      %1269 = sbr.rel (0) target = $region77
    $region76: #{tpu_custom_call.1} parent=1 // pred_region
      %1270 = dma.done [#allocation4], 256
    $region77: #{tpu_custom_call.1} parent=1 // pred_fallthru
      _
    %1271 = vsyncpa [#allocation3], 1
    %1272 = vsyncpa [#allocation6], 1
    %1273 = vsyncpa [#allocation9], 1
    %1274 = vsyncpa [#allocation4], 1

</llo_original>
